<compile_context>
chip_gen: v6e
topology: v6e:2x2x1
jax: 0.10.0
libtpu: 0.0.40
codegen_flags: <defaults>
</compile_context>

<pallas_src>
import functools

import jax
import jax.numpy as jnp
from jax.experimental import pallas as pl
from jax.experimental.pallas import tpu as pltpu


def _stack_gated_cnn_kernel(kernel_size, eps,
                            x_ref, wconv_ref,
                            ln1_g_ref, ln1_b_ref,
                            w1_ref, b1_ref, w2_ref, b2_ref,
                            ln2_g_ref, ln2_b_ref,
                            o_ref):
    B, L, H = x_ref.shape
    BL = B * L
    NL = wconv_ref.shape[0]
    K = kernel_size
    pad = (K - 1) // 2

    # Per-tap boundary masks (computed once; loop constants). At flat row r = b*L + l,
    # tap t is valid iff 0 <= l + t - pad < L; invalid rows correspond to the Conv1d zero
    # padding (and also guard against cross-batch wrap introduced by the flat roll).
    l_idx = jax.lax.broadcasted_iota(jnp.int32, (BL, 1), 0) % L
    tap_masks = []
    for t in range(K):
        off = t - pad
        tap_masks.append(jnp.logical_and(l_idx + off >= 0, l_idx + off < L))

    h0 = x_ref[...].astype(jnp.float32).reshape(BL, H)

    def layer_body(i, h):
        # ---- GatedCNN via im2col: XLU rolls + masks, single bf16 MXU dot ----
        cols = []
        for t in range(K):                       # static, unrolled at trace time
            if t == pad:
                cols.append(h)                   # centre tap: no shift, no mask
            else:
                rolled = pltpu.roll(h, shift=(pad - t) % BL, axis=0)
                cols.append(jnp.where(tap_masks[t], rolled, 0.0))
        im2col = jnp.concatenate(cols, axis=-1).astype(jnp.bfloat16)      # (BL, K*H)
        acc = jnp.dot(im2col, wconv_ref[i],                               # (K*H, 2H) bf16
                      preferred_element_type=jnp.float32)                 # (BL, 2H) f32
        a = acc[:, :H]
        g = acc[:, H:]
        gcnn = a * jax.nn.sigmoid(g)

        # ---- residual + LayerNorm after the gated cnn (f32) ----
        xf = h + gcnn
        mu = jnp.mean(xf, axis=-1, keepdims=True)
        var = jnp.mean(jnp.square(xf - mu), axis=-1, keepdims=True)
        xn = (xf - mu) * jax.lax.rsqrt(var + eps)
        xn = xn * ln1_g_ref[i] + ln1_b_ref[i]

        # ---- feed-forward: relu(xn W1^T + b1) W2^T + b2 (bf16 MXU operands) ----
        l1 = jnp.dot(xn.astype(jnp.bfloat16), w1_ref[i],
                     preferred_element_type=jnp.float32) + b1_ref[i]
        l1 = jnp.maximum(l1, 0.0)
        l2 = jnp.dot(l1.astype(jnp.bfloat16), w2_ref[i],
                     preferred_element_type=jnp.float32) + b2_ref[i]

        # ---- residual + LayerNorm after the feed-forward (f32) ----
        y = xn + l2
        mu2 = jnp.mean(y, axis=-1, keepdims=True)
        var2 = jnp.mean(jnp.square(y - mu2), axis=-1, keepdims=True)
        yn = (y - mu2) * jax.lax.rsqrt(var2 + eps)
        return yn * ln2_g_ref[i] + ln2_b_ref[i]

    h_out = jax.lax.fori_loop(0, NL, layer_body, h0)
    o_ref[...] = h_out.reshape(B, L, H).astype(o_ref.dtype)


def stack_gated_cnn_forward(x, params, *, eps=1e-5):
    """x: (B, L, H) float32. params: stacked per-layer weights. Returns (B, L, H)."""
    B, L, H = x.shape
    w_cnn = params["w_cnn"]                            # (NL, H_out, H_in, K)
    w_gate = params["w_gate"]
    NL, _, _, K = w_cnn.shape
    assert K % 2 == 1, "kernel_size must be odd to reproduce PyTorch 'same' Conv1d"

    # Parameter plumbing in plain JAX:
    #  - per-tap weights as (NL, K, H_in, H_out), conv|gate fused along the output dim,
    #  - then flattened to the im2col weight (NL, K*H, 2H) so row t*H+c multiplies
    #    input tap t / channel c,
    #  - MXU-facing weights cast to bf16 (halves HBM->VMEM bytes, doubles MXU rate).
    cnn_taps = jnp.transpose(w_cnn, (0, 3, 2, 1))      # (NL, K, H_in, H_out)
    gate_taps = jnp.transpose(w_gate, (0, 3, 2, 1))
    wconv = jnp.concatenate([cnn_taps, gate_taps], axis=-1)        # (NL, K, H, 2H)
    wconv = wconv.reshape(NL, K * H, 2 * H).astype(jnp.bfloat16)   # (NL, K*H, 2H)

    w1_t = jnp.transpose(params["w_ff1"], (0, 2, 1)).astype(jnp.bfloat16)   # x @ W^T
    w2_t = jnp.transpose(params["w_ff2"], (0, 2, 1)).astype(jnp.bfloat16)
    b1 = params["b_ff1"].reshape(NL, 1, H).astype(jnp.float32)
    b2 = params["b_ff2"].reshape(NL, 1, H).astype(jnp.float32)
    ln1_g = params["ln1_g"].reshape(NL, 1, H).astype(jnp.float32)
    ln1_b = params["ln1_b"].reshape(NL, 1, H).astype(jnp.float32)
    ln2_g = params["ln2_g"].reshape(NL, 1, H).astype(jnp.float32)
    ln2_b = params["ln2_b"].reshape(NL, 1, H).astype(jnp.float32)

    kernel = functools.partial(_stack_gated_cnn_kernel, K, eps)

    # Single invocation: all operands are full-array VMEM blocks (default BlockSpecs),
    # the layer loop runs inside the kernel over the resident weight stack.
    return pl.pallas_call(
        kernel,
        out_shape=jax.ShapeDtypeStruct((B, L, H), x.dtype),
    )(x, wconv, ln1_g, ln1_b, w1_t, b1, w2_t, b2, ln2_g, ln2_b)


# ---------------------------- pure-JAX reference ----------------------------

def _layer_norm_ref(v, g, b, eps):
    mu = jnp.mean(v, axis=-1, keepdims=True)
    var = jnp.mean(jnp.square(v - mu), axis=-1, keepdims=True)
    return (v - mu) * jax.lax.rsqrt(var + eps) * g + b


def stack_gated_cnn_reference(x, params, eps=1e-5):
    """Mirrors the PyTorch forward exactly (Conv1d along seq, channels=H, no bias), in f32."""
    B, L, H = x.shape
    NL = params["w_cnn"].shape[0]
    K = params["w_cnn"].shape[-1]
    pad = (K - 1) // 2

    def conv1d(v, w_):                                  # w_: (H_out, H_in, K)
        vp = jnp.pad(v, ((0, 0), (pad, pad), (0, 0)))
        out = jnp.zeros((B, L, H), jnp.float32)
        for t in range(K):
            out = out + vp[:, t:t + L, :] @ w_[:, :, t].T
        return out

    for i in range(NL):
        a = conv1d(x, params["w_cnn"][i])
        g = conv1d(x, params["w_gate"][i])
        x = x + a * jax.nn.sigmoid(g)
        x = _layer_norm_ref(x, params["ln1_g"][i], params["ln1_b"][i], eps)
        l1 = jax.nn.relu(x @ params["w_ff1"][i].T + params["b_ff1"][i])
        l2 = l1 @ params["w_ff2"][i].T + params["b_ff2"][i]
        x = _layer_norm_ref(x + l2, params["ln2_g"][i], params["ln2_b"][i], eps)
    return x


if __name__ == "__main__":
    # Small but MXU/vreg-friendly shapes: batch=4, seq=32, hidden=128, 2 layers, k=3.
    B, L, H = 4, 32, 128
    NL, K = 2, 3

    key = jax.random.PRNGKey(0)
    keys = jax.random.split(key, 11)

    def w(k_, shape, scale=0.1):
        return scale * jax.random.normal(k_, shape, dtype=jnp.float32)

    x = jax.random.normal(keys[0], (B, L, H), dtype=jnp.float32)
    params = {
        "w_cnn":  w(keys[1], (NL, H, H, K)),   # Conv1d weight per layer (out, in, k)
        "w_gate": w(keys[2], (NL, H, H, K)),
        "ln1_g":  1.0 + w(keys[3], (NL, H)),
        "ln1_b":  w(keys[4], (NL, H)),
        "w_ff1":  w(keys[5], (NL, H, H)),      # nn.Linear weight (out, in)
        "b_ff1":  w(keys[6], (NL, H)),
        "w_ff2":  w(keys[7], (NL, H)),
        "w_ff2":  w(keys[7], (NL, H, H)),
        "b_ff2":  w(keys[8], (NL, H)),
        "ln2_g":  1.0 + w(keys[9], (NL, H)),
        "ln2_b":  w(keys[10], (NL, H)),
    }

    out = stack_gated_cnn_forward(x, params)
    out = jax.block_until_ready(out)

    ref = stack_gated_cnn_reference(x, params)
    assert out.shape == (B, L, H)
    err = jnp.max(jnp.abs(out - ref))
    # bf16 MXU operands vs a pure-f32 reference -> tolerance loosened accordingly;
    # structural errors (wrong shift/mask/weights) would be O(1), far above this.
    assert jnp.allclose(out, ref, atol=1e-1, rtol=1e-2), f"max err {err}"

    print("KERNEL_OK")
</pallas_src>

<mosaic_0001>
module attributes {stable_mosaic.version = 11 : i64} {
  func.func @_stack_gated_cnn_kernel(%arg0: memref<4x32x128xf32, #tpu.memory_space<vmem>>, %arg1: memref<2x384x256xbf16, #tpu.memory_space<vmem>>, %arg2: memref<2x1x128xf32, #tpu.memory_space<vmem>>, %arg3: memref<2x1x128xf32, #tpu.memory_space<vmem>>, %arg4: memref<2x128x128xbf16, #tpu.memory_space<vmem>>, %arg5: memref<2x1x128xf32, #tpu.memory_space<vmem>>, %arg6: memref<2x128x128xbf16, #tpu.memory_space<vmem>>, %arg7: memref<2x1x128xf32, #tpu.memory_space<vmem>>, %arg8: memref<2x1x128xf32, #tpu.memory_space<vmem>>, %arg9: memref<2x1x128xf32, #tpu.memory_space<vmem>>, %arg10: memref<4x32x128xf32, #tpu.memory_space<vmem>>) attributes {dimension_semantics = [], scalar_prefetch = 0 : i64, scratch_operands = 0 : i64, tpu.core_type = #tpu.core_type<tc>} {
    %0 = tpu.iota {dimensions = array<i32: 0>} : vector<128x1xi32>
    %c32_i32 = arith.constant 32 : i32
    %c0_i32 = arith.constant 0 : i32
    %1 = arith.cmpi eq, %c32_i32, %c0_i32 : i32
    %c1_i32 = arith.constant 1 : i32
    %2 = arith.select %1, %c1_i32, %c32_i32 : i32
    %3 = vector.broadcast %2 : i32 to vector<128x1xi32>
    %4 = arith.remsi %0, %3 : vector<128x1xi32>
    %c0_i32_0 = arith.constant 0 : i32
    %5 = vector.broadcast %c0_i32_0 : i32 to vector<128x1xi32>
    %6 = arith.cmpi ne, %4, %5 : vector<128x1xi32>
    %c0_i32_1 = arith.constant 0 : i32
    %7 = vector.broadcast %c0_i32_1 : i32 to vector<128x1xi32>
    %8 = arith.cmpi slt, %4, %7 : vector<128x1xi32>
    %c0_i32_2 = arith.constant 0 : i32
    %9 = arith.cmpi slt, %2, %c0_i32_2 : i32
    %10 = vector.broadcast %9 : i1 to vector<128x1xi1>
    %11 = vector.broadcast %10 : vector<128x1xi1> to vector<128x1xi1>
    %12 = arith.xori %8, %11 : vector<128x1xi1>
    %13 = arith.andi %12, %6 : vector<128x1xi1>
    %14 = vector.broadcast %2 : i32 to vector<128x1xi32>
    %15 = arith.addi %4, %14 : vector<128x1xi32>
    %16 = arith.select %13, %15, %4 : vector<128x1xi1>, vector<128x1xi32>
    %c-1_i32 = arith.constant -1 : i32
    %17 = vector.broadcast %c-1_i32 : i32 to vector<128x1xi32>
    %18 = arith.addi %16, %17 : vector<128x1xi32>
    %c0_i32_3 = arith.constant 0 : i32
    %19 = vector.broadcast %c0_i32_3 : i32 to vector<128x1xi32>
    %20 = arith.cmpi sge, %18, %19 : vector<128x1xi32>
    %c-1_i32_4 = arith.constant -1 : i32
    %21 = vector.broadcast %c-1_i32_4 : i32 to vector<128x1xi32>
    %22 = arith.addi %16, %21 : vector<128x1xi32>
    %c32_i32_5 = arith.constant 32 : i32
    %23 = vector.broadcast %c32_i32_5 : i32 to vector<128x1xi32>
    %24 = arith.cmpi slt, %22, %23 : vector<128x1xi32>
    %25 = arith.andi %20, %24 : vector<128x1xi1>
    %c1_i32_6 = arith.constant 1 : i32
    %26 = vector.broadcast %c1_i32_6 : i32 to vector<128x1xi32>
    %27 = arith.addi %16, %26 : vector<128x1xi32>
    %c0_i32_7 = arith.constant 0 : i32
    %28 = vector.broadcast %c0_i32_7 : i32 to vector<128x1xi32>
    %29 = arith.cmpi sge, %27, %28 : vector<128x1xi32>
    %c1_i32_8 = arith.constant 1 : i32
    %30 = vector.broadcast %c1_i32_8 : i32 to vector<128x1xi32>
    %31 = arith.addi %16, %30 : vector<128x1xi32>
    %c32_i32_9 = arith.constant 32 : i32
    %32 = vector.broadcast %c32_i32_9 : i32 to vector<128x1xi32>
    %33 = arith.cmpi slt, %31, %32 : vector<128x1xi32>
    %34 = arith.andi %29, %33 : vector<128x1xi1>
    %c0 = arith.constant 0 : index
    %c0_10 = arith.constant 0 : index
    %c0_11 = arith.constant 0 : index
    %35 = vector.load %arg0[%c0, %c0_10, %c0_11] : memref<4x32x128xf32, #tpu.memory_space<vmem>>, vector<4x32x128xf32>
    %36 = vector.shape_cast %35 : vector<4x32x128xf32> to vector<128x128xf32>
    %c0_i32_12 = arith.constant 0 : i32
    %c2_i32 = arith.constant 2 : i32
    %37 = arith.addi %c0_i32_12, %c2_i32 : i32
    %c1_i32_13 = arith.constant 1 : i32
    %38 = scf.for %arg11 = %c0_i32_12 to %37 step %c1_i32_13 iter_args(%arg12 = %36) -> (vector<128x128xf32>)  : i32 {
      %c1_i32_18 = arith.constant 1 : i32
      %41 = tpu.dynamic_rotate %arg12 by %c1_i32_18 dim 0 : vector<128x128xf32>, i32 -> vector<128x128xf32>
      %cst = arith.constant 0.000000e+00 : f32
      %42 = vector.shape_cast %25 : vector<128x1xi1> to vector<128x1xi1>
      %43 = vector.broadcast %42 : vector<128x1xi1> to vector<128x128xi1>
      %44 = vector.broadcast %cst : f32 to vector<128x128xf32>
      %45 = arith.select %43, %41, %44 : vector<128x128xi1>, vector<128x128xf32>
      %c127_i32 = arith.constant 127 : i32
      %46 = tpu.dynamic_rotate %arg12 by %c127_i32 dim 0 : vector<128x128xf32>, i32 -> vector<128x128xf32>
      %cst_19 = arith.constant 0.000000e+00 : f32
      %47 = vector.shape_cast %34 : vector<128x1xi1> to vector<128x1xi1>
      %48 = vector.broadcast %47 : vector<128x1xi1> to vector<128x128xi1>
      %49 = vector.broadcast %cst_19 : f32 to vector<128x128xf32>
      %50 = arith.select %48, %46, %49 : vector<128x128xi1>, vector<128x128xf32>
      %51 = tpu.concatenate %45, %arg12, %50 in 1 : vector<128x128xf32>, vector<128x128xf32>, vector<128x128xf32> -> vector<128x384xf32>
      %52 = arith.truncf %51 : vector<128x384xf32> to vector<128x384xbf16>
      %53 = arith.index_cast %arg11 : i32 to index
      %c0_20 = arith.constant 0 : index
      %c0_21 = arith.constant 0 : index
      %54 = vector.load %arg1[%53, %c0_20, %c0_21] : memref<2x384x256xbf16, #tpu.memory_space<vmem>>, vector<1x384x256xbf16>
      %55 = vector.shape_cast %54 : vector<1x384x256xbf16> to vector<384x256xbf16>
      %cst_22 = arith.constant dense<0.000000e+00> : vector<128x256xf32>
      %56 = tpu.matmul %52, %55, %cst_22 {dimension_numbers = #tpu.dot_dimension_numbers<[1], [0], [0], [1], [0, 0, 1, 1], [], []>} : vector<128x384xbf16>, vector<384x256xbf16>, vector<128x256xf32> -> vector<128x256xf32>
      %57 = vector.extract_strided_slice %56 {offsets = [0, 0], sizes = [128, 128], strides = [1, 1]} : vector<128x256xf32> to vector<128x128xf32>
      %58 = vector.extract_strided_slice %56 {offsets = [0, 128], sizes = [128, 128], strides = [1, 1]} : vector<128x256xf32> to vector<128x128xf32>
      %59 = arith.negf %58 : vector<128x128xf32>
      %60 = math.exp %59 : vector<128x128xf32>
      %cst_23 = arith.constant 1.000000e+00 : f32
      %61 = vector.broadcast %cst_23 : f32 to vector<128x128xf32>
      %62 = arith.addf %61, %60 : vector<128x128xf32>
      %63 = arith.divf %61, %62 : vector<128x128xf32>
      %64 = arith.mulf %57, %63 : vector<128x128xf32>
      %65 = arith.addf %arg12, %64 : vector<128x128xf32>
      %cst_24 = arith.constant dense<0.000000e+00> : vector<128xf32>
      %66 = vector.multi_reduction <add>, %65, %cst_24 [1] : vector<128x128xf32> to vector<128xf32>
      %67 = vector.shape_cast %66 : vector<128xf32> to vector<128x1xf32>
      %cst_25 = arith.constant 1.280000e+02 : f32
      %68 = vector.broadcast %cst_25 : f32 to vector<128x1xf32>
      %69 = arith.divf %67, %68 : vector<128x1xf32>
      %70 = vector.broadcast %69 : vector<128x1xf32> to vector<128x128xf32>
      %71 = arith.subf %65, %70 : vector<128x128xf32>
      %72 = arith.mulf %71, %71 : vector<128x128xf32>
      %cst_26 = arith.constant dense<0.000000e+00> : vector<128xf32>
      %73 = vector.multi_reduction <add>, %72, %cst_26 [1] : vector<128x128xf32> to vector<128xf32>
      %74 = vector.shape_cast %73 : vector<128xf32> to vector<128x1xf32>
      %cst_27 = arith.constant 1.280000e+02 : f32
      %75 = vector.broadcast %cst_27 : f32 to vector<128x1xf32>
      %76 = arith.divf %74, %75 : vector<128x1xf32>
      %77 = vector.broadcast %69 : vector<128x1xf32> to vector<128x128xf32>
      %78 = arith.subf %65, %77 : vector<128x128xf32>
      %cst_28 = arith.constant 9.99999974E-6 : f32
      %79 = vector.broadcast %cst_28 : f32 to vector<128x1xf32>
      %80 = arith.addf %76, %79 : vector<128x1xf32>
      %81 = math.rsqrt %80 : vector<128x1xf32>
      %82 = vector.broadcast %81 : vector<128x1xf32> to vector<128x128xf32>
      %83 = arith.mulf %78, %82 : vector<128x128xf32>
      %84 = arith.index_cast %arg11 : i32 to index
      %c0_29 = arith.constant 0 : index
      %c0_30 = arith.constant 0 : index
      %85 = vector.load %arg2[%84, %c0_29, %c0_30] : memref<2x1x128xf32, #tpu.memory_space<vmem>>, vector<1x1x128xf32>
      %86 = vector.shape_cast %85 : vector<1x1x128xf32> to vector<1x128xf32>
      %87 = vector.broadcast %86 : vector<1x128xf32> to vector<128x128xf32>
      %88 = arith.mulf %83, %87 : vector<128x128xf32>
      %89 = arith.index_cast %arg11 : i32 to index
      %c0_31 = arith.constant 0 : index
      %c0_32 = arith.constant 0 : index
      %90 = vector.load %arg3[%89, %c0_31, %c0_32] : memref<2x1x128xf32, #tpu.memory_space<vmem>>, vector<1x1x128xf32>
      %91 = vector.shape_cast %90 : vector<1x1x128xf32> to vector<1x128xf32>
      %92 = vector.broadcast %91 : vector<1x128xf32> to vector<128x128xf32>
      %93 = arith.addf %88, %92 : vector<128x128xf32>
      %94 = arith.truncf %93 : vector<128x128xf32> to vector<128x128xbf16>
      %95 = arith.index_cast %arg11 : i32 to index
      %c0_33 = arith.constant 0 : index
      %c0_34 = arith.constant 0 : index
      %96 = vector.load %arg4[%95, %c0_33, %c0_34] : memref<2x128x128xbf16, #tpu.memory_space<vmem>>, vector<1x128x128xbf16>
      %97 = vector.shape_cast %96 : vector<1x128x128xbf16> to vector<128x128xbf16>
      %cst_35 = arith.constant dense<0.000000e+00> : vector<128x128xf32>
      %98 = tpu.matmul %94, %97, %cst_35 {dimension_numbers = #tpu.dot_dimension_numbers<[1], [0], [0], [1], [0, 0, 1, 1], [], []>} : vector<128x128xbf16>, vector<128x128xbf16>, vector<128x128xf32> -> vector<128x128xf32>
      %99 = arith.index_cast %arg11 : i32 to index
      %c0_36 = arith.constant 0 : index
      %c0_37 = arith.constant 0 : index
      %100 = vector.load %arg5[%99, %c0_36, %c0_37] : memref<2x1x128xf32, #tpu.memory_space<vmem>>, vector<1x1x128xf32>
      %101 = vector.shape_cast %100 : vector<1x1x128xf32> to vector<1x128xf32>
      %102 = vector.broadcast %101 : vector<1x128xf32> to vector<128x128xf32>
      %103 = arith.addf %98, %102 : vector<128x128xf32>
      %cst_38 = arith.constant 0.000000e+00 : f32
      %104 = vector.broadcast %cst_38 : f32 to vector<128x128xf32>
      %105 = arith.maximumf %103, %104 : vector<128x128xf32>
      %106 = arith.truncf %105 : vector<128x128xf32> to vector<128x128xbf16>
      %107 = arith.index_cast %arg11 : i32 to index
      %c0_39 = arith.constant 0 : index
      %c0_40 = arith.constant 0 : index
      %108 = vector.load %arg6[%107, %c0_39, %c0_40] : memref<2x128x128xbf16, #tpu.memory_space<vmem>>, vector<1x128x128xbf16>
      %109 = vector.shape_cast %108 : vector<1x128x128xbf16> to vector<128x128xbf16>
      %cst_41 = arith.constant dense<0.000000e+00> : vector<128x128xf32>
      %110 = tpu.matmul %106, %109, %cst_41 {dimension_numbers = #tpu.dot_dimension_numbers<[1], [0], [0], [1], [0, 0, 1, 1], [], []>} : vector<128x128xbf16>, vector<128x128xbf16>, vector<128x128xf32> -> vector<128x128xf32>
      %111 = arith.index_cast %arg11 : i32 to index
      %c0_42 = arith.constant 0 : index
      %c0_43 = arith.constant 0 : index
      %112 = vector.load %arg7[%111, %c0_42, %c0_43] : memref<2x1x128xf32, #tpu.memory_space<vmem>>, vector<1x1x128xf32>
      %113 = vector.shape_cast %112 : vector<1x1x128xf32> to vector<1x128xf32>
      %114 = vector.broadcast %113 : vector<1x128xf32> to vector<128x128xf32>
      %115 = arith.addf %110, %114 : vector<128x128xf32>
      %116 = arith.addf %93, %115 : vector<128x128xf32>
      %cst_44 = arith.constant dense<0.000000e+00> : vector<128xf32>
      %117 = vector.multi_reduction <add>, %116, %cst_44 [1] : vector<128x128xf32> to vector<128xf32>
      %118 = vector.shape_cast %117 : vector<128xf32> to vector<128x1xf32>
      %cst_45 = arith.constant 1.280000e+02 : f32
      %119 = vector.broadcast %cst_45 : f32 to vector<128x1xf32>
      %120 = arith.divf %118, %119 : vector<128x1xf32>
      %121 = vector.broadcast %120 : vector<128x1xf32> to vector<128x128xf32>
      %122 = arith.subf %116, %121 : vector<128x128xf32>
      %123 = arith.mulf %122, %122 : vector<128x128xf32>
      %cst_46 = arith.constant dense<0.000000e+00> : vector<128xf32>
      %124 = vector.multi_reduction <add>, %123, %cst_46 [1] : vector<128x128xf32> to vector<128xf32>
      %125 = vector.shape_cast %124 : vector<128xf32> to vector<128x1xf32>
      %cst_47 = arith.constant 1.280000e+02 : f32
      %126 = vector.broadcast %cst_47 : f32 to vector<128x1xf32>
      %127 = arith.divf %125, %126 : vector<128x1xf32>
      %128 = vector.broadcast %120 : vector<128x1xf32> to vector<128x128xf32>
      %129 = arith.subf %116, %128 : vector<128x128xf32>
      %cst_48 = arith.constant 9.99999974E-6 : f32
      %130 = vector.broadcast %cst_48 : f32 to vector<128x1xf32>
      %131 = arith.addf %127, %130 : vector<128x1xf32>
      %132 = math.rsqrt %131 : vector<128x1xf32>
      %133 = vector.broadcast %132 : vector<128x1xf32> to vector<128x128xf32>
      %134 = arith.mulf %129, %133 : vector<128x128xf32>
      %135 = arith.index_cast %arg11 : i32 to index
      %c0_49 = arith.constant 0 : index
      %c0_50 = arith.constant 0 : index
      %136 = vector.load %arg8[%135, %c0_49, %c0_50] : memref<2x1x128xf32, #tpu.memory_space<vmem>>, vector<1x1x128xf32>
      %137 = vector.shape_cast %136 : vector<1x1x128xf32> to vector<1x128xf32>
      %138 = vector.broadcast %137 : vector<1x128xf32> to vector<128x128xf32>
      %139 = arith.mulf %134, %138 : vector<128x128xf32>
      %140 = arith.index_cast %arg11 : i32 to index
      %c0_51 = arith.constant 0 : index
      %c0_52 = arith.constant 0 : index
      %141 = vector.load %arg9[%140, %c0_51, %c0_52] : memref<2x1x128xf32, #tpu.memory_space<vmem>>, vector<1x1x128xf32>
      %142 = vector.shape_cast %141 : vector<1x1x128xf32> to vector<1x128xf32>
      %143 = vector.broadcast %142 : vector<1x128xf32> to vector<128x128xf32>
      %144 = arith.addf %139, %143 : vector<128x128xf32>
      scf.yield %144 : vector<128x128xf32>
    }
    %c2_i32_14 = arith.constant 2 : i32
    %39 = vector.shape_cast %38 : vector<128x128xf32> to vector<4x32x128xf32>
    %c0_15 = arith.constant 0 : index
    %c0_16 = arith.constant 0 : index
    %c0_17 = arith.constant 0 : index
    %40 = vector.load %arg10[%c0_15, %c0_16, %c0_17] : memref<4x32x128xf32, #tpu.memory_space<vmem>>, vector<4x32x128xf32>
    tpu.vector_store %arg10[%c0_15, %c0_16, %c0_17], %39 {strides = array<i32>} : memref<4x32x128xf32, #tpu.memory_space<vmem>>, vector<4x32x128xf32>,
    return
  }
}

</mosaic_0001>

<llo_original>
// kernel: tpu_custom_call.1
$region0: #{tpu_custom_call.1}
  #allocation0 [shape = 'u32[]', space=smem, size = 0x4, offset = 0x4, fixed_abs, tag = 'smem constant byte address 0x4 - core index']
  #allocation1 [shape = 'u32[144,128]{1,0:T(1,128)}', space=vmem, size = 0x12000, scoped, tag = 'internal scratch']
  %s0 = inlined_call_operand.hbm [shape: f32[4,32,128], index: 0, kind: input, shape index: {}]
  %s1 = inlined_call_operand.hbm [shape: bf16[2,384,256], index: 1, kind: input, shape index: {}]
  %s2 = inlined_call_operand.vmem [shape: f32[2,1,128], index: 2, kind: input, shape index: {}]
  %s3 = inlined_call_operand.vmem [shape: f32[2,1,128], index: 3, kind: input, shape index: {}]
  %s4 = inlined_call_operand.hbm [shape: bf16[2,128,128], index: 4, kind: input, shape index: {}]
  %s5 = inlined_call_operand.vmem [shape: f32[2,1,128], index: 5, kind: input, shape index: {}]
  %s6 = inlined_call_operand.hbm [shape: bf16[2,128,128], index: 6, kind: input, shape index: {}]
  %s7 = inlined_call_operand.vmem [shape: f32[2,1,128], index: 7, kind: input, shape index: {}]
  %s8 = inlined_call_operand.vmem [shape: f32[2,1,128], index: 8, kind: input, shape index: {}]
  %s9 = inlined_call_operand.vmem [shape: f32[2,1,128], index: 9, kind: input, shape index: {}]
  %s10 = inlined_call_operand.hbm [shape: f32[4,32,128], index: 10, kind: output, shape index: {}]
  %s11 = sld [smem:[#allocation0]]
  $region73: #{tpu_custom_call.1} parent=0
    _
  %s13 = ssub.s32 1, %s11
  %s14 = scalar_select 0, %s13, %s11
  $region1: #{tpu_custom_call.1} parent=0
    #allocation2 [shape = 'u8[65536]{0}', space=vmem, size = 0x10000, scoped, tag = 'input window, operand 0, single buffered']
    #allocation3 [shape = 's32[1]{0}', space=sflag, size = 0x4, scoped, tag = 'scoped memory for tpu_custom_call.1']
    #allocation4 [shape = 's32[1]{0}', space=sflag, size = 0x4, scoped, tag = 'scoped memory for tpu_custom_call.1']
    #allocation5 [shape = 'u8[393216]{0}', space=vmem, size = 0x60000, scoped, tag = 'input window, operand 1, single buffered']
    #allocation6 [shape = 's32[1]{0}', space=sflag, size = 0x4, scoped, tag = 'scoped memory for tpu_custom_call.1']
    #allocation7 [shape = 'u8[65536]{0}', space=vmem, size = 0x10000, scoped, tag = 'input window, operand 4, single buffered']
    #allocation8 [shape = 'u8[65536]{0}', space=vmem, size = 0x10000, scoped, tag = 'input window, operand 6, single buffered']
    #allocation9 [shape = 's32[1]{0}', space=sflag, size = 0x4, scoped, tag = 'scoped memory for tpu_custom_call.1']
    #allocation10 [shape = 'u8[65536]{0}', space=vmem, size = 0x10000, scoped, tag = 'output window, operand 0, single buffered']
    %15 = vsyncpa [#allocation3], 0
    %16 = vsyncpa [#allocation6], 0
    %17 = vsyncpa [#allocation9], 0
    %18 = vsyncpa [#allocation4], 0
    // Predicated region
    $region2: #{tpu_custom_call.1} parent=1 // pred_check
      _
    $region3: #{tpu_custom_call.1} parent=1 // pred_check_branch
      %20 = sbr.rel (0) target = $region5
    $region4: #{tpu_custom_call.1} parent=1 // pred_region
      %s22 = ssub.s32 2048, 2048
      %23 = vsyncadd [#allocation3], %s22
      %s24 = sshll.u32 [#allocation2], 4
      %s25 = int_to_ptr.vmem [resolvable:$true] %s24
      %30 = dma.hbm_to_vmem [thread:$0]  %s0, 2048, %s25, [#allocation3], 128, 128, 8
    $region5: #{tpu_custom_call.1} parent=1 // pred_fallthru
      _
    // Predicated region
    $region6: #{tpu_custom_call.1} parent=1 // pred_check
      _
    $region7: #{tpu_custom_call.1} parent=1 // pred_check_branch
      %32 = sbr.rel (0) target = $region9
    $region8: #{tpu_custom_call.1} parent=1 // pred_region
      %s34 = ssub.s32 12288, 12288
      %35 = vsyncadd [#allocation6], %s34
      %s36 = sshll.u32 [#allocation5], 4
      %s37 = int_to_ptr.vmem [resolvable:$true] %s36
      %42 = dma.hbm_to_vmem [thread:$0]  %s1, 12288, %s37, [#allocation6], 128, 128, 8
    $region9: #{tpu_custom_call.1} parent=1 // pred_fallthru
      _
    // Predicated region
    $region10: #{tpu_custom_call.1} parent=1 // pred_check
      _
    $region11: #{tpu_custom_call.1} parent=1 // pred_check_branch
      %44 = sbr.rel (0) target = $region13
    $region12: #{tpu_custom_call.1} parent=1 // pred_region
      _
    $region13: #{tpu_custom_call.1} parent=1 // pred_fallthru
      _
    // Predicated region
    $region14: #{tpu_custom_call.1} parent=1 // pred_check
      _
    $region15: #{tpu_custom_call.1} parent=1 // pred_check_branch
      %46 = sbr.rel (0) target = $region17
    $region16: #{tpu_custom_call.1} parent=1 // pred_region
      _
    $region17: #{tpu_custom_call.1} parent=1 // pred_fallthru
      _
    // Predicated region
    $region18: #{tpu_custom_call.1} parent=1 // pred_check
      _
    $region19: #{tpu_custom_call.1} parent=1 // pred_check_branch
      %48 = sbr.rel (0) target = $region21
    $region20: #{tpu_custom_call.1} parent=1 // pred_region
      %s50 = ssub.s32 2048, 2048
      %51 = vsyncadd [#allocation6], %s50
      %s52 = sshll.u32 [#allocation7], 4
      %s53 = int_to_ptr.vmem [resolvable:$true] %s52
      %58 = dma.hbm_to_vmem [thread:$0]  %s4, 2048, %s53, [#allocation6], 64, 64, 4
    $region21: #{tpu_custom_call.1} parent=1 // pred_fallthru
      _
    // Predicated region
    $region22: #{tpu_custom_call.1} parent=1 // pred_check
      _
    $region23: #{tpu_custom_call.1} parent=1 // pred_check_branch
      %60 = sbr.rel (0) target = $region25
    $region24: #{tpu_custom_call.1} parent=1 // pred_region
      _
    $region25: #{tpu_custom_call.1} parent=1 // pred_fallthru
      _
    // Predicated region
    $region26: #{tpu_custom_call.1} parent=1 // pred_check
      _
    $region27: #{tpu_custom_call.1} parent=1 // pred_check_branch
      %62 = sbr.rel (0) target = $region29
    $region28: #{tpu_custom_call.1} parent=1 // pred_region
      %s64 = ssub.s32 2048, 2048
      %65 = vsyncadd [#allocation9], %s64
      %s66 = sshll.u32 [#allocation8], 4
      %s67 = int_to_ptr.vmem [resolvable:$true] %s66
      %72 = dma.hbm_to_vmem [thread:$0]  %s6, 2048, %s67, [#allocation9], 64, 64, 4
    $region29: #{tpu_custom_call.1} parent=1 // pred_fallthru
      _
    // Predicated region
    $region30: #{tpu_custom_call.1} parent=1 // pred_check
      _
    $region31: #{tpu_custom_call.1} parent=1 // pred_check_branch
      %74 = sbr.rel (0) target = $region33
    $region32: #{tpu_custom_call.1} parent=1 // pred_region
      _
    $region33: #{tpu_custom_call.1} parent=1 // pred_fallthru
      _
    // Predicated region
    $region34: #{tpu_custom_call.1} parent=1 // pred_check
      _
    $region35: #{tpu_custom_call.1} parent=1 // pred_check_branch
      %76 = sbr.rel (0) target = $region37
    $region36: #{tpu_custom_call.1} parent=1 // pred_region
      _
    $region37: #{tpu_custom_call.1} parent=1 // pred_fallthru
      _
    // Predicated region
    $region38: #{tpu_custom_call.1} parent=1 // pred_check
      _
    $region39: #{tpu_custom_call.1} parent=1 // pred_check_branch
      %78 = sbr.rel (0) target = $region41
    $region40: #{tpu_custom_call.1} parent=1 // pred_region
      _
    $region41: #{tpu_custom_call.1} parent=1 // pred_fallthru
      _
    // Predicated region
    $region42: #{tpu_custom_call.1} parent=1 // pred_check
      _
    $region43: #{tpu_custom_call.1} parent=1 // pred_check_branch
      %80 = sbr.rel (0) target = $region45
    $region44: #{tpu_custom_call.1} parent=1 // pred_region
      %81 = dma.done [#allocation3], 2048
    $region45: #{tpu_custom_call.1} parent=1 // pred_fallthru
      _
    // Predicated region
    $region46: #{tpu_custom_call.1} parent=1 // pred_check
      _
    $region47: #{tpu_custom_call.1} parent=1 // pred_check_branch
      %83 = sbr.rel (0) target = $region49
    $region48: #{tpu_custom_call.1} parent=1 // pred_region
      %84 = dma.done [#allocation6], 12288
    $region49: #{tpu_custom_call.1} parent=1 // pred_fallthru
      _
    // Predicated region
    $region50: #{tpu_custom_call.1} parent=1 // pred_check
      _
    $region51: #{tpu_custom_call.1} parent=1 // pred_check_branch
      %86 = sbr.rel (0) target = $region53
    $region52: #{tpu_custom_call.1} parent=1 // pred_region
      %87 = dma.done [#allocation6], 2048
    $region53: #{tpu_custom_call.1} parent=1 // pred_fallthru
      _
    // Predicated region
    $region54: #{tpu_custom_call.1} parent=1 // pred_check
      _
    $region55: #{tpu_custom_call.1} parent=1 // pred_check_branch
      %89 = sbr.rel (0) target = $region57
    $region56: #{tpu_custom_call.1} parent=1 // pred_region
      %90 = dma.done [#allocation9], 2048
    $region57: #{tpu_custom_call.1} parent=1 // pred_fallthru
      _
    %v92 = vlaneseq
    %v93 = vshrl.u32 %v92, 7
    %v94 = vadd.s32 %v93, 8
    %v95 = vadd.s32 %v93, 16
    %v96 = vadd.s32 %v93, 24
    %v97 = vadd.s32 %v93, 32
    %v98 = vadd.s32 %v93, 40
    %v99 = vadd.s32 %v93, 48
    %v100 = vadd.s32 %v93, 56
    %v101 = vadd.s32 %v93, 64
    %v102 = vadd.s32 %v93, 72
    %v103 = vadd.s32 %v93, 80
    %v104 = vadd.s32 %v93, 88
    %v105 = vadd.s32 %v93, 96
    %v106 = vadd.s32 %v93, 104
    %v107 = vadd.s32 %v93, 112
    %v108 = vadd.s32 %v93, 120
    %vm109 = vcmp.lt.s32.totalorder %v93, 0
    %v110 = vsub.s32 0, %v93
    %v111 = vsel %vm109, %v110, %v93
    %v112 = vshrl.u32 %v111, 5
    %v113 = vand.u32 %v111, 31
    %v114 = vsub.s32 0, %v113
    %v115 = vsel %vm109, %v114, %v113
    %vm116 = vcmp.lt.s32.totalorder %v94, 0
    %v117 = vsub.s32 0, %v94
    %v118 = vsel %vm116, %v117, %v94
    %v119 = vshrl.u32 %v118, 5
    %v120 = vand.u32 %v118, 31
    %v121 = vsub.s32 0, %v120
    %v122 = vsel %vm116, %v121, %v120
    %vm123 = vcmp.lt.s32.totalorder %v95, 0
    %v124 = vsub.s32 0, %v95
    %v125 = vsel %vm123, %v124, %v95
    %v126 = vshrl.u32 %v125, 5
    %v127 = vand.u32 %v125, 31
    %v128 = vsub.s32 0, %v127
    %v129 = vsel %vm123, %v128, %v127
    %vm130 = vcmp.lt.s32.totalorder %v96, 0
    %v131 = vsub.s32 0, %v96
    %v132 = vsel %vm130, %v131, %v96
    %v133 = vshrl.u32 %v132, 5
    %v134 = vand.u32 %v132, 31
    %v135 = vsub.s32 0, %v134
    %v136 = vsel %vm130, %v135, %v134
    %vm137 = vcmp.lt.s32.totalorder %v97, 0
    %v138 = vsub.s32 0, %v97
    %v139 = vsel %vm137, %v138, %v97
    %v140 = vshrl.u32 %v139, 5
    %v141 = vand.u32 %v139, 31
    %v142 = vsub.s32 0, %v141
    %v143 = vsel %vm137, %v142, %v141
    %vm144 = vcmp.lt.s32.totalorder %v98, 0
    %v145 = vsub.s32 0, %v98
    %v146 = vsel %vm144, %v145, %v98
    %v147 = vshrl.u32 %v146, 5
    %v148 = vand.u32 %v146, 31
    %v149 = vsub.s32 0, %v148
    %v150 = vsel %vm144, %v149, %v148
    %vm151 = vcmp.lt.s32.totalorder %v99, 0
    %v152 = vsub.s32 0, %v99
    %v153 = vsel %vm151, %v152, %v99
    %v154 = vshrl.u32 %v153, 5
    %v155 = vand.u32 %v153, 31
    %v156 = vsub.s32 0, %v155
    %v157 = vsel %vm151, %v156, %v155
    %vm158 = vcmp.lt.s32.totalorder %v100, 0
    %v159 = vsub.s32 0, %v100
    %v160 = vsel %vm158, %v159, %v100
    %v161 = vshrl.u32 %v160, 5
    %v162 = vand.u32 %v160, 31
    %v163 = vsub.s32 0, %v162
    %v164 = vsel %vm158, %v163, %v162
    %vm165 = vcmp.lt.s32.totalorder %v101, 0
    %v166 = vsub.s32 0, %v101
    %v167 = vsel %vm165, %v166, %v101
    %v168 = vshrl.u32 %v167, 5
    %v169 = vand.u32 %v167, 31
    %v170 = vsub.s32 0, %v169
    %v171 = vsel %vm165, %v170, %v169
    %vm172 = vcmp.lt.s32.totalorder %v102, 0
    %v173 = vsub.s32 0, %v102
    %v174 = vsel %vm172, %v173, %v102
    %v175 = vshrl.u32 %v174, 5
    %v176 = vand.u32 %v174, 31
    %v177 = vsub.s32 0, %v176
    %v178 = vsel %vm172, %v177, %v176
    %vm179 = vcmp.lt.s32.totalorder %v103, 0
    %v180 = vsub.s32 0, %v103
    %v181 = vsel %vm179, %v180, %v103
    %v182 = vshrl.u32 %v181, 5
    %v183 = vand.u32 %v181, 31
    %v184 = vsub.s32 0, %v183
    %v185 = vsel %vm179, %v184, %v183
    %vm186 = vcmp.lt.s32.totalorder %v104, 0
    %v187 = vsub.s32 0, %v104
    %v188 = vsel %vm186, %v187, %v104
    %v189 = vshrl.u32 %v188, 5
    %v190 = vand.u32 %v188, 31
    %v191 = vsub.s32 0, %v190
    %v192 = vsel %vm186, %v191, %v190
    %vm193 = vcmp.lt.s32.totalorder %v105, 0
    %v194 = vsub.s32 0, %v105
    %v195 = vsel %vm193, %v194, %v105
    %v196 = vshrl.u32 %v195, 5
    %v197 = vand.u32 %v195, 31
    %v198 = vsub.s32 0, %v197
    %v199 = vsel %vm193, %v198, %v197
    %vm200 = vcmp.lt.s32.totalorder %v106, 0
    %v201 = vsub.s32 0, %v106
    %v202 = vsel %vm200, %v201, %v106
    %v203 = vshrl.u32 %v202, 5
    %v204 = vand.u32 %v202, 31
    %v205 = vsub.s32 0, %v204
    %v206 = vsel %vm200, %v205, %v204
    %vm207 = vcmp.lt.s32.totalorder %v107, 0
    %v208 = vsub.s32 0, %v107
    %v209 = vsel %vm207, %v208, %v107
    %v210 = vshrl.u32 %v209, 5
    %v211 = vand.u32 %v209, 31
    %v212 = vsub.s32 0, %v211
    %v213 = vsel %vm207, %v212, %v211
    %vm214 = vcmp.lt.s32.totalorder %v108, 0
    %v215 = vsub.s32 0, %v108
    %v216 = vsel %vm214, %v215, %v108
    %v217 = vshrl.u32 %v216, 5
    %v218 = vand.u32 %v216, 31
    %v219 = vsub.s32 0, %v218
    %v220 = vsel %vm214, %v219, %v218
    %vm221 = vcmp.ne.s32.totalorder %v115, 0
    %vm222 = vcmp.ne.s32.totalorder %v122, 0
    %vm223 = vcmp.ne.s32.totalorder %v129, 0
    %vm224 = vcmp.ne.s32.totalorder %v136, 0
    %vm225 = vcmp.ne.s32.totalorder %v143, 0
    %vm226 = vcmp.ne.s32.totalorder %v150, 0
    %vm227 = vcmp.ne.s32.totalorder %v157, 0
    %vm228 = vcmp.ne.s32.totalorder %v164, 0
    %vm229 = vcmp.ne.s32.totalorder %v171, 0
    %vm230 = vcmp.ne.s32.totalorder %v178, 0
    %vm231 = vcmp.ne.s32.totalorder %v185, 0
    %vm232 = vcmp.ne.s32.totalorder %v192, 0
    %vm233 = vcmp.ne.s32.totalorder %v199, 0
    %vm234 = vcmp.ne.s32.totalorder %v206, 0
    %vm235 = vcmp.ne.s32.totalorder %v213, 0
    %vm236 = vcmp.ne.s32.totalorder %v220, 0
    %vm237 = vcmp.lt.s32.totalorder %v115, 0
    %vm238 = vcmp.lt.s32.totalorder %v122, 0
    %vm239 = vcmp.lt.s32.totalorder %v129, 0
    %vm240 = vcmp.lt.s32.totalorder %v136, 0
    %vm241 = vcmp.lt.s32.totalorder %v143, 0
    %vm242 = vcmp.lt.s32.totalorder %v150, 0
    %vm243 = vcmp.lt.s32.totalorder %v157, 0
    %vm244 = vcmp.lt.s32.totalorder %v164, 0
    %vm245 = vcmp.lt.s32.totalorder %v171, 0
    %vm246 = vcmp.lt.s32.totalorder %v178, 0
    %vm247 = vcmp.lt.s32.totalorder %v185, 0
    %vm248 = vcmp.lt.s32.totalorder %v192, 0
    %vm249 = vcmp.lt.s32.totalorder %v199, 0
    %vm250 = vcmp.lt.s32.totalorder %v206, 0
    %vm251 = vcmp.lt.s32.totalorder %v213, 0
    %vm252 = vcmp.lt.s32.totalorder %v220, 0
    %vm253 = vmand %vm237, %vm221
    %vm254 = vmand %vm238, %vm222
    %vm255 = vmand %vm239, %vm223
    %vm256 = vmand %vm240, %vm224
    %vm257 = vmand %vm241, %vm225
    %vm258 = vmand %vm242, %vm226
    %vm259 = vmand %vm243, %vm227
    %vm260 = vmand %vm244, %vm228
    %vm261 = vmand %vm245, %vm229
    %vm262 = vmand %vm246, %vm230
    %vm263 = vmand %vm247, %vm231
    %vm264 = vmand %vm248, %vm232
    %vm265 = vmand %vm249, %vm233
    %vm266 = vmand %vm250, %vm234
    %vm267 = vmand %vm251, %vm235
    %vm268 = vmand %vm252, %vm236
    %v269 = vadd.s32 %v115, 32
    %v270 = vadd.s32 %v122, 32
    %v271 = vadd.s32 %v129, 32
    %v272 = vadd.s32 %v136, 32
    %v273 = vadd.s32 %v143, 32
    %v274 = vadd.s32 %v150, 32
    %v275 = vadd.s32 %v157, 32
    %v276 = vadd.s32 %v164, 32
    %v277 = vadd.s32 %v171, 32
    %v278 = vadd.s32 %v178, 32
    %v279 = vadd.s32 %v185, 32
    %v280 = vadd.s32 %v192, 32
    %v281 = vadd.s32 %v199, 32
    %v282 = vadd.s32 %v206, 32
    %v283 = vadd.s32 %v213, 32
    %v284 = vadd.s32 %v220, 32
    %v285 = vsel %vm253, %v269, %v115
    %v286 = vsel %vm254, %v270, %v122
    %v287 = vsel %vm255, %v271, %v129
    %v288 = vsel %vm256, %v272, %v136
    %v289 = vsel %vm257, %v273, %v143
    %v290 = vsel %vm258, %v274, %v150
    %v291 = vsel %vm259, %v275, %v157
    %v292 = vsel %vm260, %v276, %v164
    %v293 = vsel %vm261, %v277, %v171
    %v294 = vsel %vm262, %v278, %v178
    %v295 = vsel %vm263, %v279, %v185
    %v296 = vsel %vm264, %v280, %v192
    %v297 = vsel %vm265, %v281, %v199
    %v298 = vsel %vm266, %v282, %v206
    %v299 = vsel %vm267, %v283, %v213
    %v300 = vsel %vm268, %v284, %v220
    %v301 = vadd.s32 %v285, 4294967295
    %v302 = vadd.s32 %v286, 4294967295
    %v303 = vadd.s32 %v287, 4294967295
    %v304 = vadd.s32 %v288, 4294967295
    %v305 = vadd.s32 %v289, 4294967295
    %v306 = vadd.s32 %v290, 4294967295
    %v307 = vadd.s32 %v291, 4294967295
    %v308 = vadd.s32 %v292, 4294967295
    %v309 = vadd.s32 %v293, 4294967295
    %v310 = vadd.s32 %v294, 4294967295
    %v311 = vadd.s32 %v295, 4294967295
    %v312 = vadd.s32 %v296, 4294967295
    %v313 = vadd.s32 %v297, 4294967295
    %v314 = vadd.s32 %v298, 4294967295
    %v315 = vadd.s32 %v299, 4294967295
    %v316 = vadd.s32 %v300, 4294967295
    %vm317 = vcmp.ge.s32.totalorder %v301, 0
    %vm318 = vcmp.ge.s32.totalorder %v302, 0
    %vm319 = vcmp.ge.s32.totalorder %v303, 0
    %vm320 = vcmp.ge.s32.totalorder %v304, 0
    %vm321 = vcmp.ge.s32.totalorder %v305, 0
    %vm322 = vcmp.ge.s32.totalorder %v306, 0
    %vm323 = vcmp.ge.s32.totalorder %v307, 0
    %vm324 = vcmp.ge.s32.totalorder %v308, 0
    %vm325 = vcmp.ge.s32.totalorder %v309, 0
    %vm326 = vcmp.ge.s32.totalorder %v310, 0
    %vm327 = vcmp.ge.s32.totalorder %v311, 0
    %vm328 = vcmp.ge.s32.totalorder %v312, 0
    %vm329 = vcmp.ge.s32.totalorder %v313, 0
    %vm330 = vcmp.ge.s32.totalorder %v314, 0
    %vm331 = vcmp.ge.s32.totalorder %v315, 0
    %vm332 = vcmp.ge.s32.totalorder %v316, 0
    %vm333 = vcmp.lt.s32.totalorder %v301, 32
    %vm334 = vcmp.lt.s32.totalorder %v302, 32
    %vm335 = vcmp.lt.s32.totalorder %v303, 32
    %vm336 = vcmp.lt.s32.totalorder %v304, 32
    %vm337 = vcmp.lt.s32.totalorder %v305, 32
    %vm338 = vcmp.lt.s32.totalorder %v306, 32
    %vm339 = vcmp.lt.s32.totalorder %v307, 32
    %vm340 = vcmp.lt.s32.totalorder %v308, 32
    %vm341 = vcmp.lt.s32.totalorder %v309, 32
    %vm342 = vcmp.lt.s32.totalorder %v310, 32
    %vm343 = vcmp.lt.s32.totalorder %v311, 32
    %vm344 = vcmp.lt.s32.totalorder %v312, 32
    %vm345 = vcmp.lt.s32.totalorder %v313, 32
    %vm346 = vcmp.lt.s32.totalorder %v314, 32
    %vm347 = vcmp.lt.s32.totalorder %v315, 32
    %vm348 = vcmp.lt.s32.totalorder %v316, 32
    %vm349 = vmand %vm317, %vm333
    %vm350 = vmand %vm318, %vm334
    %vm351 = vmand %vm319, %vm335
    %vm352 = vmand %vm320, %vm336
    %vm353 = vmand %vm321, %vm337
    %vm354 = vmand %vm322, %vm338
    %vm355 = vmand %vm323, %vm339
    %vm356 = vmand %vm324, %vm340
    %vm357 = vmand %vm325, %vm341
    %vm358 = vmand %vm326, %vm342
    %vm359 = vmand %vm327, %vm343
    %vm360 = vmand %vm328, %vm344
    %vm361 = vmand %vm329, %vm345
    %vm362 = vmand %vm330, %vm346
    %vm363 = vmand %vm331, %vm347
    %vm364 = vmand %vm332, %vm348
    %v365 = vadd.s32 %v285, 1
    %v366 = vadd.s32 %v286, 1
    %v367 = vadd.s32 %v287, 1
    %v368 = vadd.s32 %v288, 1
    %v369 = vadd.s32 %v289, 1
    %v370 = vadd.s32 %v290, 1
    %v371 = vadd.s32 %v291, 1
    %v372 = vadd.s32 %v292, 1
    %v373 = vadd.s32 %v293, 1
    %v374 = vadd.s32 %v294, 1
    %v375 = vadd.s32 %v295, 1
    %v376 = vadd.s32 %v296, 1
    %v377 = vadd.s32 %v297, 1
    %v378 = vadd.s32 %v298, 1
    %v379 = vadd.s32 %v299, 1
    %v380 = vadd.s32 %v300, 1
    %vm381 = vcmp.ge.s32.totalorder %v365, 0
    %vm382 = vcmp.ge.s32.totalorder %v366, 0
    %vm383 = vcmp.ge.s32.totalorder %v367, 0
    %vm384 = vcmp.ge.s32.totalorder %v368, 0
    %vm385 = vcmp.ge.s32.totalorder %v369, 0
    %vm386 = vcmp.ge.s32.totalorder %v370, 0
    %vm387 = vcmp.ge.s32.totalorder %v371, 0
    %vm388 = vcmp.ge.s32.totalorder %v372, 0
    %vm389 = vcmp.ge.s32.totalorder %v373, 0
    %vm390 = vcmp.ge.s32.totalorder %v374, 0
    %vm391 = vcmp.ge.s32.totalorder %v375, 0
    %vm392 = vcmp.ge.s32.totalorder %v376, 0
    %vm393 = vcmp.ge.s32.totalorder %v377, 0
    %vm394 = vcmp.ge.s32.totalorder %v378, 0
    %vm395 = vcmp.ge.s32.totalorder %v379, 0
    %vm396 = vcmp.ge.s32.totalorder %v380, 0
    %vm397 = vcmp.lt.s32.totalorder %v365, 32
    %vm398 = vcmp.lt.s32.totalorder %v366, 32
    %vm399 = vcmp.lt.s32.totalorder %v367, 32
    %vm400 = vcmp.lt.s32.totalorder %v368, 32
    %vm401 = vcmp.lt.s32.totalorder %v369, 32
    %vm402 = vcmp.lt.s32.totalorder %v370, 32
    %vm403 = vcmp.lt.s32.totalorder %v371, 32
    %vm404 = vcmp.lt.s32.totalorder %v372, 32
    %vm405 = vcmp.lt.s32.totalorder %v373, 32
    %vm406 = vcmp.lt.s32.totalorder %v374, 32
    %vm407 = vcmp.lt.s32.totalorder %v375, 32
    %vm408 = vcmp.lt.s32.totalorder %v376, 32
    %vm409 = vcmp.lt.s32.totalorder %v377, 32
    %vm410 = vcmp.lt.s32.totalorder %v378, 32
    %vm411 = vcmp.lt.s32.totalorder %v379, 32
    %vm412 = vcmp.lt.s32.totalorder %v380, 32
    %vm413 = vmand %vm381, %vm397
    %vm414 = vmand %vm382, %vm398
    %vm415 = vmand %vm383, %vm399
    %vm416 = vmand %vm384, %vm400
    %vm417 = vmand %vm385, %vm401
    %vm418 = vmand %vm386, %vm402
    %vm419 = vmand %vm387, %vm403
    %vm420 = vmand %vm388, %vm404
    %vm421 = vmand %vm389, %vm405
    %vm422 = vmand %vm390, %vm406
    %vm423 = vmand %vm391, %vm407
    %vm424 = vmand %vm392, %vm408
    %vm425 = vmand %vm393, %vm409
    %vm426 = vmand %vm394, %vm410
    %vm427 = vmand %vm395, %vm411
    %vm428 = vmand %vm396, %vm412
    %v429 = vld [vmem:[#allocation2] sm:$0xff]
    %v430 = vld [vmem:[#allocation2 + $0x8] sm:$0xff]
    %v431 = vld [vmem:[#allocation2 + $0x10] sm:$0xff]
    %v432 = vld [vmem:[#allocation2 + $0x18] sm:$0xff]
    %v433 = vld [vmem:[#allocation2 + $0x20] sm:$0xff]
    %v434 = vld [vmem:[#allocation2 + $0x28] sm:$0xff]
    %v435 = vld [vmem:[#allocation2 + $0x30] sm:$0xff]
    %v436 = vld [vmem:[#allocation2 + $0x38] sm:$0xff]
    %v437 = vld [vmem:[#allocation2 + $0x40] sm:$0xff]
    %v438 = vld [vmem:[#allocation2 + $0x48] sm:$0xff]
    %v439 = vld [vmem:[#allocation2 + $0x50] sm:$0xff]
    %v440 = vld [vmem:[#allocation2 + $0x58] sm:$0xff]
    %v441 = vld [vmem:[#allocation2 + $0x60] sm:$0xff]
    %v442 = vld [vmem:[#allocation2 + $0x68] sm:$0xff]
    %v443 = vld [vmem:[#allocation2 + $0x70] sm:$0xff]
    %v444 = vld [vmem:[#allocation2 + $0x78] sm:$0xff]
    loop: start=0, step=1, limit=2
    $region58: #{tpu_custom_call.1} parent=1 // loop_pre_header
      _
    $region59: #{tpu_custom_call.1} parent=1 // loop_header
      %s446 = sphi 0, %s450
      %p447 = scmp.ge.s32.totalorder %s446, 2
      %v451 = vphi %v429, %v2122
      %v452 = vphi %v430, %v2123
      %v453 = vphi %v431, %v2124
      %v454 = vphi %v432, %v2125
      %v455 = vphi %v433, %v2126
      %v456 = vphi %v434, %v2127
      %v457 = vphi %v435, %v2128
      %v458 = vphi %v436, %v2129
      %v459 = vphi %v437, %v2130
      %v460 = vphi %v438, %v2131
      %v461 = vphi %v439, %v2132
      %v462 = vphi %v440, %v2133
      %v463 = vphi %v441, %v2134
      %v464 = vphi %v442, %v2135
      %v465 = vphi %v443, %v2136
      %v466 = vphi %v444, %v2137
    $region60: #{tpu_custom_call.1} parent=1 // loop_header_branch
      %449 = sbr.rel (%p447) target = $region64
    $region61: #{tpu_custom_call.1} parent=1 // loop_body
      %v467 = vrot.slane %v451, 7
      %v468 = vrot.slane %v452, 7
      %v469 = vrot.slane %v453, 7
      %v470 = vrot.slane %v454, 7
      %v471 = vrot.slane %v455, 7
      %v472 = vrot.slane %v456, 7
      %v473 = vrot.slane %v457, 7
      %v474 = vrot.slane %v458, 7
      %v475 = vrot.slane %v459, 7
      %v476 = vrot.slane %v460, 7
      %v477 = vrot.slane %v461, 7
      %v478 = vrot.slane %v462, 7
      %v479 = vrot.slane %v463, 7
      %v480 = vrot.slane %v464, 7
      %v481 = vrot.slane %v465, 7
      %v482 = vrot.slane %v466, 7
      %vm483 = vcmp.lt.s32.totalorder %v93, 1
      %v484 = vsel %vm483, %v481, %v482
      %v485 = vsel %vm483, %v480, %v481
      %v486 = vsel %vm483, %v479, %v480
      %v487 = vsel %vm483, %v478, %v479
      %v488 = vsel %vm483, %v477, %v478
      %v489 = vsel %vm483, %v476, %v477
      %v490 = vsel %vm483, %v475, %v476
      %v491 = vsel %vm483, %v474, %v475
      %v492 = vsel %vm483, %v473, %v474
      %v493 = vsel %vm483, %v472, %v473
      %v494 = vsel %vm483, %v471, %v472
      %v495 = vsel %vm483, %v470, %v471
      %v496 = vsel %vm483, %v469, %v470
      %v497 = vsel %vm483, %v468, %v469
      %v498 = vsel %vm483, %v467, %v468
      %v499 = vsel %vm483, %v482, %v467
      %v500 = vsel %vm349, 1, 0
      %v501 = vsel %vm350, 1, 0
      %v502 = vsel %vm351, 1, 0
      %v503 = vsel %vm352, 1, 0
      %v504 = vsel %vm353, 1, 0
      %v505 = vsel %vm354, 1, 0
      %v506 = vsel %vm355, 1, 0
      %v507 = vsel %vm356, 1, 0
      %v508 = vsel %vm357, 1, 0
      %v509 = vsel %vm358, 1, 0
      %v510 = vsel %vm359, 1, 0
      %v511 = vsel %vm360, 1, 0
      %v512 = vsel %vm361, 1, 0
      %v513 = vsel %vm362, 1, 0
      %v514 = vsel %vm363, 1, 0
      %v515 = vsel %vm364, 1, 0
      %vm516 = vcmp.eq.s32.totalorder %v500, 1
      %vm517 = vcmp.eq.s32.totalorder %v501, 1
      %vm518 = vcmp.eq.s32.totalorder %v502, 1
      %vm519 = vcmp.eq.s32.totalorder %v503, 1
      %vm520 = vcmp.eq.s32.totalorder %v504, 1
      %vm521 = vcmp.eq.s32.totalorder %v505, 1
      %vm522 = vcmp.eq.s32.totalorder %v506, 1
      %vm523 = vcmp.eq.s32.totalorder %v507, 1
      %vm524 = vcmp.eq.s32.totalorder %v508, 1
      %vm525 = vcmp.eq.s32.totalorder %v509, 1
      %vm526 = vcmp.eq.s32.totalorder %v510, 1
      %vm527 = vcmp.eq.s32.totalorder %v511, 1
      %vm528 = vcmp.eq.s32.totalorder %v512, 1
      %vm529 = vcmp.eq.s32.totalorder %v513, 1
      %vm530 = vcmp.eq.s32.totalorder %v514, 1
      %vm531 = vcmp.eq.s32.totalorder %v515, 1
      %v532 = vsel %vm516, %v499, 0.0
      %v533 = vsel %vm517, %v498, 0.0
      %v534 = vsel %vm518, %v497, 0.0
      %v535 = vsel %vm519, %v496, 0.0
      %v536 = vsel %vm520, %v495, 0.0
      %v537 = vsel %vm521, %v494, 0.0
      %v538 = vsel %vm522, %v493, 0.0
      %v539 = vsel %vm523, %v492, 0.0
      %v540 = vsel %vm524, %v491, 0.0
      %v541 = vsel %vm525, %v490, 0.0
      %v542 = vsel %vm526, %v489, 0.0
      %v543 = vsel %vm527, %v488, 0.0
      %v544 = vsel %vm528, %v487, 0.0
      %v545 = vsel %vm529, %v486, 0.0
      %v546 = vsel %vm530, %v485, 0.0
      %v547 = vsel %vm531, %v484, 0.0
      %v548 = vrot.slane %v451, 1
      %v549 = vrot.slane %v452, 1
      %v550 = vrot.slane %v453, 1
      %v551 = vrot.slane %v454, 1
      %v552 = vrot.slane %v455, 1
      %v553 = vrot.slane %v456, 1
      %v554 = vrot.slane %v457, 1
      %v555 = vrot.slane %v458, 1
      %v556 = vrot.slane %v459, 1
      %v557 = vrot.slane %v460, 1
      %v558 = vrot.slane %v461, 1
      %v559 = vrot.slane %v462, 1
      %v560 = vrot.slane %v463, 1
      %v561 = vrot.slane %v464, 1
      %v562 = vrot.slane %v465, 1
      %v563 = vrot.slane %v466, 1
      %vm564 = vcmp.lt.s32.totalorder %v93, 7
      %v565 = vsel %vm564, %v562, %v563
      %v566 = vsel %vm564, %v561, %v562
      %v567 = vsel %vm564, %v560, %v561
      %v568 = vsel %vm564, %v559, %v560
      %v569 = vsel %vm564, %v558, %v559
      %v570 = vsel %vm564, %v557, %v558
      %v571 = vsel %vm564, %v556, %v557
      %v572 = vsel %vm564, %v555, %v556
      %v573 = vsel %vm564, %v554, %v555
      %v574 = vsel %vm564, %v553, %v554
      %v575 = vsel %vm564, %v552, %v553
      %v576 = vsel %vm564, %v551, %v552
      %v577 = vsel %vm564, %v550, %v551
      %v578 = vsel %vm564, %v549, %v550
      %v579 = vsel %vm564, %v548, %v549
      %v580 = vsel %vm564, %v563, %v548
      %v581 = vsel %vm413, 1, 0
      %v582 = vsel %vm414, 1, 0
      %v583 = vsel %vm415, 1, 0
      %v584 = vsel %vm416, 1, 0
      %v585 = vsel %vm417, 1, 0
      %v586 = vsel %vm418, 1, 0
      %v587 = vsel %vm419, 1, 0
      %v588 = vsel %vm420, 1, 0
      %v589 = vsel %vm421, 1, 0
      %v590 = vsel %vm422, 1, 0
      %v591 = vsel %vm423, 1, 0
      %v592 = vsel %vm424, 1, 0
      %v593 = vsel %vm425, 1, 0
      %v594 = vsel %vm426, 1, 0
      %v595 = vsel %vm427, 1, 0
      %v596 = vsel %vm428, 1, 0
      %vm597 = vcmp.eq.s32.totalorder %v581, 1
      %vm598 = vcmp.eq.s32.totalorder %v582, 1
      %vm599 = vcmp.eq.s32.totalorder %v583, 1
      %vm600 = vcmp.eq.s32.totalorder %v584, 1
      %vm601 = vcmp.eq.s32.totalorder %v585, 1
      %vm602 = vcmp.eq.s32.totalorder %v586, 1
      %vm603 = vcmp.eq.s32.totalorder %v587, 1
      %vm604 = vcmp.eq.s32.totalorder %v588, 1
      %vm605 = vcmp.eq.s32.totalorder %v589, 1
      %vm606 = vcmp.eq.s32.totalorder %v590, 1
      %vm607 = vcmp.eq.s32.totalorder %v591, 1
      %vm608 = vcmp.eq.s32.totalorder %v592, 1
      %vm609 = vcmp.eq.s32.totalorder %v593, 1
      %vm610 = vcmp.eq.s32.totalorder %v594, 1
      %vm611 = vcmp.eq.s32.totalorder %v595, 1
      %vm612 = vcmp.eq.s32.totalorder %v596, 1
      %v613 = vsel %vm597, %v579, 0.0
      %v614 = vsel %vm598, %v578, 0.0
      %v615 = vsel %vm599, %v577, 0.0
      %v616 = vsel %vm600, %v576, 0.0
      %v617 = vsel %vm601, %v575, 0.0
      %v618 = vsel %vm602, %v574, 0.0
      %v619 = vsel %vm603, %v573, 0.0
      %v620 = vsel %vm604, %v572, 0.0
      %v621 = vsel %vm605, %v571, 0.0
      %v622 = vsel %vm606, %v570, 0.0
      %v623 = vsel %vm607, %v569, 0.0
      %v624 = vsel %vm608, %v568, 0.0
      %v625 = vsel %vm609, %v567, 0.0
      %v626 = vsel %vm610, %v566, 0.0
      %v627 = vsel %vm611, %v565, 0.0
      %v628 = vsel %vm612, %v580, 0.0
      %v629 = vpack.c.bf16 %v533, %v532
      %v630 = vpack.c.bf16 %v452, %v451
      %v631 = vpack.c.bf16 %v614, %v613
      %v632 = vpack.c.bf16 %v535, %v534
      %v633 = vpack.c.bf16 %v454, %v453
      %v634 = vpack.c.bf16 %v616, %v615
      %v635 = vpack.c.bf16 %v537, %v536
      %v636 = vpack.c.bf16 %v456, %v455
      %v637 = vpack.c.bf16 %v618, %v617
      %v638 = vpack.c.bf16 %v539, %v538
      %v639 = vpack.c.bf16 %v458, %v457
      %v640 = vpack.c.bf16 %v620, %v619
      %v641 = vpack.c.bf16 %v541, %v540
      %v642 = vpack.c.bf16 %v460, %v459
      %v643 = vpack.c.bf16 %v622, %v621
      %v644 = vpack.c.bf16 %v543, %v542
      %v645 = vpack.c.bf16 %v462, %v461
      %v646 = vpack.c.bf16 %v624, %v623
      %v647 = vpack.c.bf16 %v545, %v544
      %v648 = vpack.c.bf16 %v464, %v463
      %v649 = vpack.c.bf16 %v626, %v625
      %v650 = vpack.c.bf16 %v547, %v546
      %v651 = vpack.c.bf16 %v466, %v465
      %v652 = vpack.c.bf16 %v628, %v627
      %s653 = smul.u32 %s446, 96
      %s654 = smul.addr %s653, 4
      %s655 = scalar_lea.vmem [#allocation5], %s654
      %v656 = vld [vmem:[%s655] sm:$0xff]
      %v657 = vld [vmem:[%s655 + $0x8] sm:$0xff]
      %v658 = vld [vmem:[%s655 + $0x10] sm:$0xff]
      %v659 = vld [vmem:[%s655 + $0x18] sm:$0xff]
      %v660 = vld [vmem:[%s655 + $0x20] sm:$0xff]
      %v661 = vld [vmem:[%s655 + $0x28] sm:$0xff]
      %v662 = vld [vmem:[%s655 + $0x30] sm:$0xff]
      %v663 = vld [vmem:[%s655 + $0x38] sm:$0xff]
      %v664 = vld [vmem:[%s655 + $0x40] sm:$0xff]
      %v665 = vld [vmem:[%s655 + $0x48] sm:$0xff]
      %v666 = vld [vmem:[%s655 + $0x50] sm:$0xff]
      %v667 = vld [vmem:[%s655 + $0x58] sm:$0xff]
      %v668 = vld [vmem:[%s655 + $0x60] sm:$0xff]
      %v669 = vld [vmem:[%s655 + $0x68] sm:$0xff]
      %v670 = vld [vmem:[%s655 + $0x70] sm:$0xff]
      %v671 = vld [vmem:[%s655 + $0x78] sm:$0xff]
      %v672 = vld [vmem:[%s655 + $0x80] sm:$0xff]
      %v673 = vld [vmem:[%s655 + $0x88] sm:$0xff]
      %v674 = vld [vmem:[%s655 + $0x90] sm:$0xff]
      %v675 = vld [vmem:[%s655 + $0x98] sm:$0xff]
      %v676 = vld [vmem:[%s655 + $0xa0] sm:$0xff]
      %v677 = vld [vmem:[%s655 + $0xa8] sm:$0xff]
      %v678 = vld [vmem:[%s655 + $0xb0] sm:$0xff]
      %v679 = vld [vmem:[%s655 + $0xb8] sm:$0xff]
      %v680 = vld [vmem:[%s655 + $0xc0] sm:$0xff]
      %v681 = vld [vmem:[%s655 + $0xc8] sm:$0xff]
      %v682 = vld [vmem:[%s655 + $0xd0] sm:$0xff]
      %v683 = vld [vmem:[%s655 + $0xd8] sm:$0xff]
      %v684 = vld [vmem:[%s655 + $0xe0] sm:$0xff]
      %v685 = vld [vmem:[%s655 + $0xe8] sm:$0xff]
      %v686 = vld [vmem:[%s655 + $0xf0] sm:$0xff]
      %v687 = vld [vmem:[%s655 + $0xf8] sm:$0xff]
      %v688 = vld [vmem:[%s655 + $0x100] sm:$0xff]
      %v689 = vld [vmem:[%s655 + $0x108] sm:$0xff]
      %v690 = vld [vmem:[%s655 + $0x110] sm:$0xff]
      %v691 = vld [vmem:[%s655 + $0x118] sm:$0xff]
      %v692 = vld [vmem:[%s655 + $0x120] sm:$0xff]
      %v693 = vld [vmem:[%s655 + $0x128] sm:$0xff]
      %v694 = vld [vmem:[%s655 + $0x130] sm:$0xff]
      %v695 = vld [vmem:[%s655 + $0x138] sm:$0xff]
      %v696 = vld [vmem:[%s655 + $0x140] sm:$0xff]
      %v697 = vld [vmem:[%s655 + $0x148] sm:$0xff]
      %v698 = vld [vmem:[%s655 + $0x150] sm:$0xff]
      %v699 = vld [vmem:[%s655 + $0x158] sm:$0xff]
      %v700 = vld [vmem:[%s655 + $0x160] sm:$0xff]
      %v701 = vld [vmem:[%s655 + $0x168] sm:$0xff]
      %v702 = vld [vmem:[%s655 + $0x170] sm:$0xff]
      %v703 = vld [vmem:[%s655 + $0x178] sm:$0xff]
      %v752 = vunpack.c.l.b16 %v656
      %v753 = vunpack.c.h.b16 %v656
      %v754 = vunpack.c.l.b16 %v657
      %v755 = vunpack.c.h.b16 %v657
      %v756 = vunpack.c.l.b16 %v658
      %v757 = vunpack.c.h.b16 %v658
      %v758 = vunpack.c.l.b16 %v659
      %v759 = vunpack.c.h.b16 %v659
      %v760 = vunpack.c.l.b16 %v660
      %v761 = vunpack.c.h.b16 %v660
      %v762 = vunpack.c.l.b16 %v661
      %v763 = vunpack.c.h.b16 %v661
      %v764 = vunpack.c.l.b16 %v662
      %v765 = vunpack.c.h.b16 %v662
      %v766 = vunpack.c.l.b16 %v663
      %v767 = vunpack.c.h.b16 %v663
      %v768 = vunpack.c.l.b16 %v664
      %v769 = vunpack.c.h.b16 %v664
      %v770 = vunpack.c.l.b16 %v665
      %v771 = vunpack.c.h.b16 %v665
      %v772 = vunpack.c.l.b16 %v666
      %v773 = vunpack.c.h.b16 %v666
      %v774 = vunpack.c.l.b16 %v667
      %v775 = vunpack.c.h.b16 %v667
      %v776 = vunpack.c.l.b16 %v668
      %v777 = vunpack.c.h.b16 %v668
      %v778 = vunpack.c.l.b16 %v669
      %v779 = vunpack.c.h.b16 %v669
      %v780 = vunpack.c.l.b16 %v670
      %v781 = vunpack.c.h.b16 %v670
      %v782 = vunpack.c.l.b16 %v671
      %v783 = vunpack.c.h.b16 %v671
      %v784 = vunpack.c.l.b16 %v672
      %v785 = vunpack.c.h.b16 %v672
      %v786 = vunpack.c.l.b16 %v673
      %v787 = vunpack.c.h.b16 %v673
      %v788 = vunpack.c.l.b16 %v674
      %v789 = vunpack.c.h.b16 %v674
      %v790 = vunpack.c.l.b16 %v675
      %v791 = vunpack.c.h.b16 %v675
      %v792 = vunpack.c.l.b16 %v676
      %v793 = vunpack.c.h.b16 %v676
      %v794 = vunpack.c.l.b16 %v677
      %v795 = vunpack.c.h.b16 %v677
      %v796 = vunpack.c.l.b16 %v678
      %v797 = vunpack.c.h.b16 %v678
      %v798 = vunpack.c.l.b16 %v679
      %v799 = vunpack.c.h.b16 %v679
      %v800 = vunpack.c.l.b16 %v680
      %v801 = vunpack.c.h.b16 %v680
      %v802 = vunpack.c.l.b16 %v681
      %v803 = vunpack.c.h.b16 %v681
      %v804 = vunpack.c.l.b16 %v682
      %v805 = vunpack.c.h.b16 %v682
      %v806 = vunpack.c.l.b16 %v683
      %v807 = vunpack.c.h.b16 %v683
      %v808 = vunpack.c.l.b16 %v684
      %v809 = vunpack.c.h.b16 %v684
      %v810 = vunpack.c.l.b16 %v685
      %v811 = vunpack.c.h.b16 %v685
      %v812 = vunpack.c.l.b16 %v686
      %v813 = vunpack.c.h.b16 %v686
      %v814 = vunpack.c.l.b16 %v687
      %v815 = vunpack.c.h.b16 %v687
      %v816 = vunpack.c.l.b16 %v688
      %v817 = vunpack.c.h.b16 %v688
      %v818 = vunpack.c.l.b16 %v689
      %v819 = vunpack.c.h.b16 %v689
      %v820 = vunpack.c.l.b16 %v690
      %v821 = vunpack.c.h.b16 %v690
      %v822 = vunpack.c.l.b16 %v691
      %v823 = vunpack.c.h.b16 %v691
      %v824 = vunpack.c.l.b16 %v692
      %v825 = vunpack.c.h.b16 %v692
      %v826 = vunpack.c.l.b16 %v693
      %v827 = vunpack.c.h.b16 %v693
      %v828 = vunpack.c.l.b16 %v694
      %v829 = vunpack.c.h.b16 %v694
      %v830 = vunpack.c.l.b16 %v695
      %v831 = vunpack.c.h.b16 %v695
      %v832 = vunpack.c.l.b16 %v696
      %v833 = vunpack.c.h.b16 %v696
      %v834 = vunpack.c.l.b16 %v697
      %v835 = vunpack.c.h.b16 %v697
      %v836 = vunpack.c.l.b16 %v698
      %v837 = vunpack.c.h.b16 %v698
      %v838 = vunpack.c.l.b16 %v699
      %v839 = vunpack.c.h.b16 %v699
      %v840 = vunpack.c.l.b16 %v700
      %v841 = vunpack.c.h.b16 %v700
      %v842 = vunpack.c.l.b16 %v701
      %v843 = vunpack.c.h.b16 %v701
      %v844 = vunpack.c.l.b16 %v702
      %v845 = vunpack.c.h.b16 %v702
      %v846 = vunpack.c.l.b16 %v703
      %v847 = vunpack.c.h.b16 %v703
      %v848 = vpack.c.b16 %v754, %v752
      %v849 = vpack.c.b16 %v755, %v753
      %v850 = vpack.c.b16 %v758, %v756
      %v851 = vpack.c.b16 %v759, %v757
      %v852 = vpack.c.b16 %v762, %v760
      %v853 = vpack.c.b16 %v763, %v761
      %v854 = vpack.c.b16 %v766, %v764
      %v855 = vpack.c.b16 %v767, %v765
      %v856 = vpack.c.b16 %v770, %v768
      %v857 = vpack.c.b16 %v771, %v769
      %v858 = vpack.c.b16 %v774, %v772
      %v859 = vpack.c.b16 %v775, %v773
      %v860 = vpack.c.b16 %v778, %v776
      %v861 = vpack.c.b16 %v779, %v777
      %v862 = vpack.c.b16 %v782, %v780
      %v863 = vpack.c.b16 %v783, %v781
      %v864 = vpack.c.b16 %v786, %v784
      %v865 = vpack.c.b16 %v787, %v785
      %v866 = vpack.c.b16 %v790, %v788
      %v867 = vpack.c.b16 %v791, %v789
      %v868 = vpack.c.b16 %v794, %v792
      %v869 = vpack.c.b16 %v795, %v793
      %v870 = vpack.c.b16 %v798, %v796
      %v871 = vpack.c.b16 %v799, %v797
      %v872 = vpack.c.b16 %v802, %v800
      %v873 = vpack.c.b16 %v803, %v801
      %v874 = vpack.c.b16 %v806, %v804
      %v875 = vpack.c.b16 %v807, %v805
      %v876 = vpack.c.b16 %v810, %v808
      %v877 = vpack.c.b16 %v811, %v809
      %v878 = vpack.c.b16 %v814, %v812
      %v879 = vpack.c.b16 %v815, %v813
      %v880 = vpack.c.b16 %v818, %v816
      %v881 = vpack.c.b16 %v819, %v817
      %v882 = vpack.c.b16 %v822, %v820
      %v883 = vpack.c.b16 %v823, %v821
      %v884 = vpack.c.b16 %v826, %v824
      %v885 = vpack.c.b16 %v827, %v825
      %v886 = vpack.c.b16 %v830, %v828
      %v887 = vpack.c.b16 %v831, %v829
      %v888 = vpack.c.b16 %v834, %v832
      %v889 = vpack.c.b16 %v835, %v833
      %v890 = vpack.c.b16 %v838, %v836
      %v891 = vpack.c.b16 %v839, %v837
      %v892 = vpack.c.b16 %v842, %v840
      %v893 = vpack.c.b16 %v843, %v841
      %v894 = vpack.c.b16 %v846, %v844
      %v895 = vpack.c.b16 %v847, %v845
      %944 = vmatprep.subr.bf16.mxu0 %v863
      %945 = vmatpush1.bf16.msra.mxu0 %v862
      %946 = vmatprep.subr.bf16.mxu0 %v861
      %947 = vmatpush1.bf16.msra.mxu0 %v860
      %948 = vmatprep.subr.bf16.mxu0 %v859
      %949 = vmatpush1.bf16.msra.mxu0 %v858
      %950 = vmatprep.subr.bf16.mxu0 %v857
      %951 = vmatpush1.bf16.msra.mxu0 %v856
      %952 = vmatprep.subr.bf16.mxu0 %v855
      %953 = vmatpush1.bf16.msra.mxu0 %v854
      %954 = vmatprep.subr.bf16.mxu0 %v853
      %955 = vmatpush1.bf16.msra.mxu0 %v852
      %956 = vmatprep.subr.bf16.mxu0 %v851
      %957 = vmatpush1.bf16.msra.mxu0 %v850
      %958 = vmatprep.subr.bf16.mxu0 %v849
      %959 = vmatpush1.bf16.msra.mxu0 %v848
      %960 = vmatprep.subr.bf16.mxu0 %v879
      %961 = vmatpush2.bf16.msra.mxu0 %v878
      %962 = vmatprep.subr.bf16.mxu0 %v877
      %963 = vmatpush2.bf16.msra.mxu0 %v876
      %964 = vmatprep.subr.bf16.mxu0 %v875
      %965 = vmatpush2.bf16.msra.mxu0 %v874
      %966 = vmatprep.subr.bf16.mxu0 %v873
      %967 = vmatpush2.bf16.msra.mxu0 %v872
      %968 = vmatprep.subr.bf16.mxu0 %v871
      %969 = vmatpush2.bf16.msra.mxu0 %v870
      %970 = vmatprep.subr.bf16.mxu0 %v869
      %971 = vmatpush2.bf16.msra.mxu0 %v868
      %972 = vmatprep.subr.bf16.mxu0 %v867
      %973 = vmatpush2.bf16.msra.mxu0 %v866
      %974 = vmatprep.subr.bf16.mxu0 %v865
      %975 = vmatpush2.bf16.msra.mxu0 %v864
      %976 = vmatprep.mubr.bf16.mxu0 %v630
      %977 = vmatmul.mubr.bf16.gmra.mxu0 %v629
      %v978 = vpop.f32.mrf.mxu0
      %v979 = vadd.f32 0.0, %v978
      %v980 = vpop.f32.mrf.mxu0
      %v981 = vadd.f32 0.0, %v980
      %v982 = vpop.f32.mrf.mxu0
      %v983 = vadd.f32 0.0, %v982
      %v984 = vpop.f32.mrf.mxu0
      %v985 = vadd.f32 0.0, %v984
      %986 = vmatprep.mubr.bf16.mxu0 %v633
      %987 = vmatmul.mubr.bf16.gmra.mxu0 %v632
      %v988 = vpop.f32.mrf.mxu0
      %v989 = vadd.f32 0.0, %v988
      %v990 = vpop.f32.mrf.mxu0
      %v991 = vadd.f32 0.0, %v990
      %v992 = vpop.f32.mrf.mxu0
      %v993 = vadd.f32 0.0, %v992
      %v994 = vpop.f32.mrf.mxu0
      %v995 = vadd.f32 0.0, %v994
      %996 = vmatprep.mubr.bf16.mxu0 %v636
      %997 = vmatmul.mubr.bf16.gmra.mxu0 %v635
      %v998 = vpop.f32.mrf.mxu0
      %v999 = vadd.f32 0.0, %v998
      %v1000 = vpop.f32.mrf.mxu0
      %v1001 = vadd.f32 0.0, %v1000
      %v1002 = vpop.f32.mrf.mxu0
      %v1003 = vadd.f32 0.0, %v1002
      %v1004 = vpop.f32.mrf.mxu0
      %v1005 = vadd.f32 0.0, %v1004
      %1006 = vmatprep.mubr.bf16.mxu0 %v639
      %1007 = vmatmul.mubr.bf16.gmra.mxu0 %v638
      %v1008 = vpop.f32.mrf.mxu0
      %v1009 = vadd.f32 0.0, %v1008
      %v1010 = vpop.f32.mrf.mxu0
      %v1011 = vadd.f32 0.0, %v1010
      %v1012 = vpop.f32.mrf.mxu0
      %v1013 = vadd.f32 0.0, %v1012
      %v1014 = vpop.f32.mrf.mxu0
      %v1015 = vadd.f32 0.0, %v1014
      %1016 = vmatprep.mubr.bf16.mxu0 %v642
      %1017 = vmatmul.mubr.bf16.gmra.mxu0 %v641
      %v1018 = vpop.f32.mrf.mxu0
      %v1019 = vadd.f32 0.0, %v1018
      %v1020 = vpop.f32.mrf.mxu0
      %v1021 = vadd.f32 0.0, %v1020
      %v1022 = vpop.f32.mrf.mxu0
      %v1023 = vadd.f32 0.0, %v1022
      %v1024 = vpop.f32.mrf.mxu0
      %v1025 = vadd.f32 0.0, %v1024
      %1026 = vmatprep.mubr.bf16.mxu0 %v645
      %1027 = vmatmul.mubr.bf16.gmra.mxu0 %v644
      %v1028 = vpop.f32.mrf.mxu0
      %v1029 = vadd.f32 0.0, %v1028
      %v1030 = vpop.f32.mrf.mxu0
      %v1031 = vadd.f32 0.0, %v1030
      %v1032 = vpop.f32.mrf.mxu0
      %v1033 = vadd.f32 0.0, %v1032
      %v1034 = vpop.f32.mrf.mxu0
      %v1035 = vadd.f32 0.0, %v1034
      %1036 = vmatprep.mubr.bf16.mxu0 %v648
      %1037 = vmatmul.mubr.bf16.gmra.mxu0 %v647
      %v1038 = vpop.f32.mrf.mxu0
      %v1039 = vadd.f32 0.0, %v1038
      %v1040 = vpop.f32.mrf.mxu0
      %v1041 = vadd.f32 0.0, %v1040
      %v1042 = vpop.f32.mrf.mxu0
      %v1043 = vadd.f32 0.0, %v1042
      %v1044 = vpop.f32.mrf.mxu0
      %v1045 = vadd.f32 0.0, %v1044
      %1046 = vmatprep.mubr.bf16.mxu0 %v651
      %1047 = vmatmul.mubr.bf16.gmra.mxu0 %v650
      %v1048 = vpop.f32.mrf.mxu0
      %v1049 = vadd.f32 0.0, %v1048
      %v1050 = vpop.f32.mrf.mxu0
      %v1051 = vadd.f32 0.0, %v1050
      %v1052 = vpop.f32.mrf.mxu0
      %v1053 = vadd.f32 0.0, %v1052
      %v1054 = vpop.f32.mrf.mxu0
      %v1055 = vadd.f32 0.0, %v1054
      %1056 = vdwg.mxu0
      %1057 = vmatprep.subr.bf16.mxu0 %v895
      %1058 = vmatpush1.bf16.msra.mxu0 %v894
      %1059 = vmatprep.subr.bf16.mxu0 %v893
      %1060 = vmatpush1.bf16.msra.mxu0 %v892
      %1061 = vmatprep.subr.bf16.mxu0 %v891
      %1062 = vmatpush1.bf16.msra.mxu0 %v890
      %1063 = vmatprep.subr.bf16.mxu0 %v889
      %1064 = vmatpush1.bf16.msra.mxu0 %v888
      %1065 = vmatprep.subr.bf16.mxu0 %v887
      %1066 = vmatpush1.bf16.msra.mxu0 %v886
      %1067 = vmatprep.subr.bf16.mxu0 %v885
      %1068 = vmatpush1.bf16.msra.mxu0 %v884
      %1069 = vmatprep.subr.bf16.mxu0 %v883
      %1070 = vmatpush1.bf16.msra.mxu0 %v882
      %1071 = vmatprep.subr.bf16.mxu0 %v881
      %1072 = vmatpush1.bf16.msra.mxu0 %v880
      %1073 = vmatprep.subr.bf16.mxu0 0
      %1074 = vmatpush2.bf16.msra.mxu0 0
      %1075 = vmatprep.subr.bf16.mxu0 0
      %1076 = vmatpush2.bf16.msra.mxu0 0
      %1077 = vmatprep.subr.bf16.mxu0 0
      %1078 = vmatpush2.bf16.msra.mxu0 0
      %1079 = vmatprep.subr.bf16.mxu0 0
      %1080 = vmatpush2.bf16.msra.mxu0 0
      %1081 = vmatprep.subr.bf16.mxu0 0
      %1082 = vmatpush2.bf16.msra.mxu0 0
      %1083 = vmatprep.subr.bf16.mxu0 0
      %1084 = vmatpush2.bf16.msra.mxu0 0
      %1085 = vmatprep.subr.bf16.mxu0 0
      %1086 = vmatpush2.bf16.msra.mxu0 0
      %1087 = vmatprep.subr.bf16.mxu0 0
      %1088 = vmatpush2.bf16.msra.mxu0 0
      %1089 = vmatprep.mubr.bf16.mxu0 0
      %1090 = vmatmul.mubr.bf16.gmra.mxu0 %v631
      %v1091 = vpop.f32.mrf.mxu0
      %v1092 = vadd.f32 %v979, %v1091
      %v1093 = vpop.f32.mrf.mxu0
      %v1094 = vadd.f32 %v981, %v1093
      %v1095 = vpop.f32.mrf.mxu0
      %v1096 = vadd.f32 %v983, %v1095
      %v1097 = vpop.f32.mrf.mxu0
      %v1098 = vadd.f32 %v985, %v1097
      %1099 = vmatprep.mubr.bf16.mxu0 0
      %1100 = vmatmul.mubr.bf16.gmra.mxu0 %v634
      %v1101 = vpop.f32.mrf.mxu0
      %v1102 = vadd.f32 %v989, %v1101
      %v1103 = vpop.f32.mrf.mxu0
      %v1104 = vadd.f32 %v991, %v1103
      %v1105 = vpop.f32.mrf.mxu0
      %v1106 = vadd.f32 %v993, %v1105
      %v1107 = vpop.f32.mrf.mxu0
      %v1108 = vadd.f32 %v995, %v1107
      %1109 = vmatprep.mubr.bf16.mxu0 0
      %1110 = vmatmul.mubr.bf16.gmra.mxu0 %v637
      %v1111 = vpop.f32.mrf.mxu0
      %v1112 = vadd.f32 %v999, %v1111
      %v1113 = vpop.f32.mrf.mxu0
      %v1114 = vadd.f32 %v1001, %v1113
      %v1115 = vpop.f32.mrf.mxu0
      %v1116 = vadd.f32 %v1003, %v1115
      %v1117 = vpop.f32.mrf.mxu0
      %v1118 = vadd.f32 %v1005, %v1117
      %1119 = vmatprep.mubr.bf16.mxu0 0
      %1120 = vmatmul.mubr.bf16.gmra.mxu0 %v640
      %v1121 = vpop.f32.mrf.mxu0
      %v1122 = vadd.f32 %v1009, %v1121
      %v1123 = vpop.f32.mrf.mxu0
      %v1124 = vadd.f32 %v1011, %v1123
      %v1125 = vpop.f32.mrf.mxu0
      %v1126 = vadd.f32 %v1013, %v1125
      %v1127 = vpop.f32.mrf.mxu0
      %v1128 = vadd.f32 %v1015, %v1127
      %1129 = vmatprep.mubr.bf16.mxu0 0
      %1130 = vmatmul.mubr.bf16.gmra.mxu0 %v643
      %v1131 = vpop.f32.mrf.mxu0
      %v1132 = vadd.f32 %v1019, %v1131
      %v1133 = vpop.f32.mrf.mxu0
      %v1134 = vadd.f32 %v1021, %v1133
      %v1135 = vpop.f32.mrf.mxu0
      %v1136 = vadd.f32 %v1023, %v1135
      %v1137 = vpop.f32.mrf.mxu0
      %v1138 = vadd.f32 %v1025, %v1137
      %1139 = vmatprep.mubr.bf16.mxu0 0
      %1140 = vmatmul.mubr.bf16.gmra.mxu0 %v646
      %v1141 = vpop.f32.mrf.mxu0
      %v1142 = vadd.f32 %v1029, %v1141
      %v1143 = vpop.f32.mrf.mxu0
      %v1144 = vadd.f32 %v1031, %v1143
      %v1145 = vpop.f32.mrf.mxu0
      %v1146 = vadd.f32 %v1033, %v1145
      %v1147 = vpop.f32.mrf.mxu0
      %v1148 = vadd.f32 %v1035, %v1147
      %1149 = vmatprep.mubr.bf16.mxu0 0
      %1150 = vmatmul.mubr.bf16.gmra.mxu0 %v649
      %v1151 = vpop.f32.mrf.mxu0
      %v1152 = vadd.f32 %v1039, %v1151
      %v1153 = vpop.f32.mrf.mxu0
      %v1154 = vadd.f32 %v1041, %v1153
      %v1155 = vpop.f32.mrf.mxu0
      %v1156 = vadd.f32 %v1043, %v1155
      %v1157 = vpop.f32.mrf.mxu0
      %v1158 = vadd.f32 %v1045, %v1157
      %1159 = vmatprep.mubr.bf16.mxu0 0
      %1160 = vmatmul.mubr.bf16.gmra.mxu0 %v652
      %v1161 = vpop.f32.mrf.mxu0
      %v1162 = vadd.f32 %v1049, %v1161
      %v1163 = vpop.f32.mrf.mxu0
      %v1164 = vadd.f32 %v1051, %v1163
      %v1165 = vpop.f32.mrf.mxu0
      %v1166 = vadd.f32 %v1053, %v1165
      %v1167 = vpop.f32.mrf.mxu0
      %v1168 = vadd.f32 %v1055, %v1167
      %1169 = vdwg.mxu0
      %v1170 = vxor.u32 %v1094, 2147483648
      %v1171 = vxor.u32 %v1098, 2147483648
      %v1172 = vxor.u32 %v1104, 2147483648
      %v1173 = vxor.u32 %v1108, 2147483648
      %v1174 = vxor.u32 %v1114, 2147483648
      %v1175 = vxor.u32 %v1118, 2147483648
      %v1176 = vxor.u32 %v1124, 2147483648
      %v1177 = vxor.u32 %v1128, 2147483648
      %v1178 = vxor.u32 %v1134, 2147483648
      %v1179 = vxor.u32 %v1138, 2147483648
      %v1180 = vxor.u32 %v1144, 2147483648
      %v1181 = vxor.u32 %v1148, 2147483648
      %v1182 = vxor.u32 %v1154, 2147483648
      %v1183 = vxor.u32 %v1158, 2147483648
      %v1184 = vxor.u32 %v1164, 2147483648
      %v1185 = vxor.u32 %v1168, 2147483648
      %v1186 = vmul.f32 %v1170, 1.442695
      %v1187 = vpow.pop %v1186
      %v1188 = vmul.f32 %v1171, 1.442695
      %v1189 = vpow.pop %v1188
      %v1190 = vmul.f32 %v1172, 1.442695
      %v1191 = vpow.pop %v1190
      %v1192 = vmul.f32 %v1173, 1.442695
      %v1193 = vpow.pop %v1192
      %v1194 = vmul.f32 %v1174, 1.442695
      %v1195 = vpow.pop %v1194
      %v1196 = vmul.f32 %v1175, 1.442695
      %v1197 = vpow.pop %v1196
      %v1198 = vmul.f32 %v1176, 1.442695
      %v1199 = vpow.pop %v1198
      %v1200 = vmul.f32 %v1177, 1.442695
      %v1201 = vpow.pop %v1200
      %v1202 = vmul.f32 %v1178, 1.442695
      %v1203 = vpow.pop %v1202
      %v1204 = vmul.f32 %v1179, 1.442695
      %v1205 = vpow.pop %v1204
      %v1206 = vmul.f32 %v1180, 1.442695
      %v1207 = vpow.pop %v1206
      %v1208 = vmul.f32 %v1181, 1.442695
      %v1209 = vpow.pop %v1208
      %v1210 = vmul.f32 %v1182, 1.442695
      %v1211 = vpow.pop %v1210
      %v1212 = vmul.f32 %v1183, 1.442695
      %v1213 = vpow.pop %v1212
      %v1214 = vmul.f32 %v1184, 1.442695
      %v1215 = vpow.pop %v1214
      %v1216 = vmul.f32 %v1185, 1.442695
      %v1217 = vpow.pop %v1216
      %v1218 = vadd.f32 %v1187, 1.0
      %v1219 = vadd.f32 %v1189, 1.0
      %v1220 = vadd.f32 %v1191, 1.0
      %v1221 = vadd.f32 %v1193, 1.0
      %v1222 = vadd.f32 %v1195, 1.0
      %v1223 = vadd.f32 %v1197, 1.0
      %v1224 = vadd.f32 %v1199, 1.0
      %v1225 = vadd.f32 %v1201, 1.0
      %v1226 = vadd.f32 %v1203, 1.0
      %v1227 = vadd.f32 %v1205, 1.0
      %v1228 = vadd.f32 %v1207, 1.0
      %v1229 = vadd.f32 %v1209, 1.0
      %v1230 = vadd.f32 %v1211, 1.0
      %v1231 = vadd.f32 %v1213, 1.0
      %v1232 = vadd.f32 %v1215, 1.0
      %v1233 = vadd.f32 %v1217, 1.0
      %v1234 = vrcp.pop %v1218
      %v1235 = vmul.f32 1.0, %v1234
      %v1236 = vrcp.pop %v1219
      %v1237 = vmul.f32 1.0, %v1236
      %v1238 = vrcp.pop %v1220
      %v1239 = vmul.f32 1.0, %v1238
      %v1240 = vrcp.pop %v1221
      %v1241 = vmul.f32 1.0, %v1240
      %v1242 = vrcp.pop %v1222
      %v1243 = vmul.f32 1.0, %v1242
      %v1244 = vrcp.pop %v1223
      %v1245 = vmul.f32 1.0, %v1244
      %v1246 = vrcp.pop %v1224
      %v1247 = vmul.f32 1.0, %v1246
      %v1248 = vrcp.pop %v1225
      %v1249 = vmul.f32 1.0, %v1248
      %v1250 = vrcp.pop %v1226
      %v1251 = vmul.f32 1.0, %v1250
      %v1252 = vrcp.pop %v1227
      %v1253 = vmul.f32 1.0, %v1252
      %v1254 = vrcp.pop %v1228
      %v1255 = vmul.f32 1.0, %v1254
      %v1256 = vrcp.pop %v1229
      %v1257 = vmul.f32 1.0, %v1256
      %v1258 = vrcp.pop %v1230
      %v1259 = vmul.f32 1.0, %v1258
      %v1260 = vrcp.pop %v1231
      %v1261 = vmul.f32 1.0, %v1260
      %v1262 = vrcp.pop %v1232
      %v1263 = vmul.f32 1.0, %v1262
      %v1264 = vrcp.pop %v1233
      %v1265 = vmul.f32 1.0, %v1264
      %v1266 = vmul.f32 %v1092, %v1235
      %v1267 = vmul.f32 %v1096, %v1237
      %v1268 = vmul.f32 %v1102, %v1239
      %v1269 = vmul.f32 %v1106, %v1241
      %v1270 = vmul.f32 %v1112, %v1243
      %v1271 = vmul.f32 %v1116, %v1245
      %v1272 = vmul.f32 %v1122, %v1247
      %v1273 = vmul.f32 %v1126, %v1249
      %v1274 = vmul.f32 %v1132, %v1251
      %v1275 = vmul.f32 %v1136, %v1253
      %v1276 = vmul.f32 %v1142, %v1255
      %v1277 = vmul.f32 %v1146, %v1257
      %v1278 = vmul.f32 %v1152, %v1259
      %v1279 = vmul.f32 %v1156, %v1261
      %v1280 = vmul.f32 %v1162, %v1263
      %v1281 = vmul.f32 %v1166, %v1265
      %v1282 = vadd.f32 %v451, %v1266
      %v1283 = vadd.f32 %v452, %v1267
      %v1284 = vadd.f32 %v453, %v1268
      %v1285 = vadd.f32 %v454, %v1269
      %v1286 = vadd.f32 %v455, %v1270
      %v1287 = vadd.f32 %v456, %v1271
      %v1288 = vadd.f32 %v457, %v1272
      %v1289 = vadd.f32 %v458, %v1273
      %v1290 = vadd.f32 %v459, %v1274
      %v1291 = vadd.f32 %v460, %v1275
      %v1292 = vadd.f32 %v461, %v1276
      %v1293 = vadd.f32 %v462, %v1277
      %v1294 = vadd.f32 %v463, %v1278
      %v1295 = vadd.f32 %v464, %v1279
      %v1296 = vadd.f32 %v465, %v1280
      %v1297 = vadd.f32 %v466, %v1281
      %1298 = vadd.xlane.f32.xlu0 %v1282
      %v1299 = vpop.xlane.xlu0 %1298
      %1300 = vadd.xlane.f32.xlu0 %v1283
      %v1301 = vpop.xlane.xlu0 %1300
      %1302 = vadd.xlane.f32.xlu0 %v1284
      %v1303 = vpop.xlane.xlu0 %1302
      %1304 = vadd.xlane.f32.xlu0 %v1285
      %v1305 = vpop.xlane.xlu0 %1304
      %1306 = vadd.xlane.f32.xlu0 %v1286
      %v1307 = vpop.xlane.xlu0 %1306
      %1308 = vadd.xlane.f32.xlu0 %v1287
      %v1309 = vpop.xlane.xlu0 %1308
      %1310 = vadd.xlane.f32.xlu0 %v1288
      %v1311 = vpop.xlane.xlu0 %1310
      %1312 = vadd.xlane.f32.xlu0 %v1289
      %v1313 = vpop.xlane.xlu0 %1312
      %1314 = vadd.xlane.f32.xlu0 %v1290
      %v1315 = vpop.xlane.xlu0 %1314
      %1316 = vadd.xlane.f32.xlu0 %v1291
      %v1317 = vpop.xlane.xlu0 %1316
      %1318 = vadd.xlane.f32.xlu0 %v1292
      %v1319 = vpop.xlane.xlu0 %1318
      %1320 = vadd.xlane.f32.xlu0 %v1293
      %v1321 = vpop.xlane.xlu0 %1320
      %1322 = vadd.xlane.f32.xlu0 %v1294
      %v1323 = vpop.xlane.xlu0 %1322
      %1324 = vadd.xlane.f32.xlu0 %v1295
      %v1325 = vpop.xlane.xlu0 %1324
      %1326 = vadd.xlane.f32.xlu0 %v1296
      %v1327 = vpop.xlane.xlu0 %1326
      %1328 = vadd.xlane.f32.xlu0 %v1297
      %v1329 = vpop.xlane.xlu0 %1328
      %v1330 = vrcp.pop 128.0
      %v1331 = vmul.f32 %v1299, %v1330
      %v1332 = vmul.f32 %v1301, %v1330
      %v1333 = vmul.f32 %v1303, %v1330
      %v1334 = vmul.f32 %v1305, %v1330
      %v1335 = vmul.f32 %v1307, %v1330
      %v1336 = vmul.f32 %v1309, %v1330
      %v1337 = vmul.f32 %v1311, %v1330
      %v1338 = vmul.f32 %v1313, %v1330
      %v1339 = vmul.f32 %v1315, %v1330
      %v1340 = vmul.f32 %v1317, %v1330
      %v1341 = vmul.f32 %v1319, %v1330
      %v1342 = vmul.f32 %v1321, %v1330
      %v1343 = vmul.f32 %v1323, %v1330
      %v1344 = vmul.f32 %v1325, %v1330
      %v1345 = vmul.f32 %v1327, %v1330
      %v1346 = vmul.f32 %v1329, %v1330
      %v1347 = vsub.f32 %v1282, %v1331
      %v1348 = vsub.f32 %v1283, %v1332
      %v1349 = vsub.f32 %v1284, %v1333
      %v1350 = vsub.f32 %v1285, %v1334
      %v1351 = vsub.f32 %v1286, %v1335
      %v1352 = vsub.f32 %v1287, %v1336
      %v1353 = vsub.f32 %v1288, %v1337
      %v1354 = vsub.f32 %v1289, %v1338
      %v1355 = vsub.f32 %v1290, %v1339
      %v1356 = vsub.f32 %v1291, %v1340
      %v1357 = vsub.f32 %v1292, %v1341
      %v1358 = vsub.f32 %v1293, %v1342
      %v1359 = vsub.f32 %v1294, %v1343
      %v1360 = vsub.f32 %v1295, %v1344
      %v1361 = vsub.f32 %v1296, %v1345
      %v1362 = vsub.f32 %v1297, %v1346
      %v1363 = vmul.f32 %v1347, %v1347
      %v1364 = vmul.f32 %v1348, %v1348
      %v1365 = vmul.f32 %v1349, %v1349
      %v1366 = vmul.f32 %v1350, %v1350
      %v1367 = vmul.f32 %v1351, %v1351
      %v1368 = vmul.f32 %v1352, %v1352
      %v1369 = vmul.f32 %v1353, %v1353
      %v1370 = vmul.f32 %v1354, %v1354
      %v1371 = vmul.f32 %v1355, %v1355
      %v1372 = vmul.f32 %v1356, %v1356
      %v1373 = vmul.f32 %v1357, %v1357
      %v1374 = vmul.f32 %v1358, %v1358
      %v1375 = vmul.f32 %v1359, %v1359
      %v1376 = vmul.f32 %v1360, %v1360
      %v1377 = vmul.f32 %v1361, %v1361
      %v1378 = vmul.f32 %v1362, %v1362
      %1379 = vadd.xlane.f32.xlu0 %v1363
      %v1380 = vpop.xlane.xlu0 %1379
      %1381 = vadd.xlane.f32.xlu0 %v1364
      %v1382 = vpop.xlane.xlu0 %1381
      %1383 = vadd.xlane.f32.xlu0 %v1365
      %v1384 = vpop.xlane.xlu0 %1383
      %1385 = vadd.xlane.f32.xlu0 %v1366
      %v1386 = vpop.xlane.xlu0 %1385
      %1387 = vadd.xlane.f32.xlu0 %v1367
      %v1388 = vpop.xlane.xlu0 %1387
      %1389 = vadd.xlane.f32.xlu0 %v1368
      %v1390 = vpop.xlane.xlu0 %1389
      %1391 = vadd.xlane.f32.xlu0 %v1369
      %v1392 = vpop.xlane.xlu0 %1391
      %1393 = vadd.xlane.f32.xlu0 %v1370
      %v1394 = vpop.xlane.xlu0 %1393
      %1395 = vadd.xlane.f32.xlu0 %v1371
      %v1396 = vpop.xlane.xlu0 %1395
      %1397 = vadd.xlane.f32.xlu0 %v1372
      %v1398 = vpop.xlane.xlu0 %1397
      %1399 = vadd.xlane.f32.xlu0 %v1373
      %v1400 = vpop.xlane.xlu0 %1399
      %1401 = vadd.xlane.f32.xlu0 %v1374
      %v1402 = vpop.xlane.xlu0 %1401
      %1403 = vadd.xlane.f32.xlu0 %v1375
      %v1404 = vpop.xlane.xlu0 %1403
      %1405 = vadd.xlane.f32.xlu0 %v1376
      %v1406 = vpop.xlane.xlu0 %1405
      %1407 = vadd.xlane.f32.xlu0 %v1377
      %v1408 = vpop.xlane.xlu0 %1407
      %1409 = vadd.xlane.f32.xlu0 %v1378
      %v1410 = vpop.xlane.xlu0 %1409
      %v1411 = vmul.f32 %v1380, %v1330
      %v1412 = vmul.f32 %v1382, %v1330
      %v1413 = vmul.f32 %v1384, %v1330
      %v1414 = vmul.f32 %v1386, %v1330
      %v1415 = vmul.f32 %v1388, %v1330
      %v1416 = vmul.f32 %v1390, %v1330
      %v1417 = vmul.f32 %v1392, %v1330
      %v1418 = vmul.f32 %v1394, %v1330
      %v1419 = vmul.f32 %v1396, %v1330
      %v1420 = vmul.f32 %v1398, %v1330
      %v1421 = vmul.f32 %v1400, %v1330
      %v1422 = vmul.f32 %v1402, %v1330
      %v1423 = vmul.f32 %v1404, %v1330
      %v1424 = vmul.f32 %v1406, %v1330
      %v1425 = vmul.f32 %v1408, %v1330
      %v1426 = vmul.f32 %v1410, %v1330
      %v1427 = vadd.f32 %v1411, 1e-05
      %v1428 = vadd.f32 %v1412, 1e-05
      %v1429 = vadd.f32 %v1413, 1e-05
      %v1430 = vadd.f32 %v1414, 1e-05
      %v1431 = vadd.f32 %v1415, 1e-05
      %v1432 = vadd.f32 %v1416, 1e-05
      %v1433 = vadd.f32 %v1417, 1e-05
      %v1434 = vadd.f32 %v1418, 1e-05
      %v1435 = vadd.f32 %v1419, 1e-05
      %v1436 = vadd.f32 %v1420, 1e-05
      %v1437 = vadd.f32 %v1421, 1e-05
      %v1438 = vadd.f32 %v1422, 1e-05
      %v1439 = vadd.f32 %v1423, 1e-05
      %v1440 = vadd.f32 %v1424, 1e-05
      %v1441 = vadd.f32 %v1425, 1e-05
      %v1442 = vadd.f32 %v1426, 1e-05
      %v1443 = vrsqrt.pop %v1427
      %v1444 = vrsqrt.pop %v1428
      %v1445 = vrsqrt.pop %v1429
      %v1446 = vrsqrt.pop %v1430
      %v1447 = vrsqrt.pop %v1431
      %v1448 = vrsqrt.pop %v1432
      %v1449 = vrsqrt.pop %v1433
      %v1450 = vrsqrt.pop %v1434
      %v1451 = vrsqrt.pop %v1435
      %v1452 = vrsqrt.pop %v1436
      %v1453 = vrsqrt.pop %v1437
      %v1454 = vrsqrt.pop %v1438
      %v1455 = vrsqrt.pop %v1439
      %v1456 = vrsqrt.pop %v1440
      %v1457 = vrsqrt.pop %v1441
      %v1458 = vrsqrt.pop %v1442
      %v1459 = vmul.f32 %v1347, %v1443
      %v1460 = vmul.f32 %v1348, %v1444
      %v1461 = vmul.f32 %v1349, %v1445
      %v1462 = vmul.f32 %v1350, %v1446
      %v1463 = vmul.f32 %v1351, %v1447
      %v1464 = vmul.f32 %v1352, %v1448
      %v1465 = vmul.f32 %v1353, %v1449
      %v1466 = vmul.f32 %v1354, %v1450
      %v1467 = vmul.f32 %v1355, %v1451
      %v1468 = vmul.f32 %v1356, %v1452
      %v1469 = vmul.f32 %v1357, %v1453
      %v1470 = vmul.f32 %v1358, %v1454
      %v1471 = vmul.f32 %v1359, %v1455
      %v1472 = vmul.f32 %v1360, %v1456
      %v1473 = vmul.f32 %v1361, %v1457
      %v1474 = vmul.f32 %v1362, %v1458
      %s1475 = scalar_lea.vmem %s2, %s446
      %v1476 = vld [vmem:[%s1475] sm:$0x1]
      %v1478 = vlaneseq
      %v1479 = vshrl.u32 %v1478, 7
      %v1480 = vsub.s32 0, %v1479
      %v1481 = vrot.slane %v1476, %v1480
      %v1483 = vmul.f32 %v1459, %v1481
      %v1484 = vmul.f32 %v1460, %v1481
      %v1485 = vmul.f32 %v1461, %v1481
      %v1486 = vmul.f32 %v1462, %v1481
      %v1487 = vmul.f32 %v1463, %v1481
      %v1488 = vmul.f32 %v1464, %v1481
      %v1489 = vmul.f32 %v1465, %v1481
      %v1490 = vmul.f32 %v1466, %v1481
      %v1491 = vmul.f32 %v1467, %v1481
      %v1492 = vmul.f32 %v1468, %v1481
      %v1493 = vmul.f32 %v1469, %v1481
      %v1494 = vmul.f32 %v1470, %v1481
      %v1495 = vmul.f32 %v1471, %v1481
      %v1496 = vmul.f32 %v1472, %v1481
      %v1497 = vmul.f32 %v1473, %v1481
      %v1498 = vmul.f32 %v1474, %v1481
      %s1499 = scalar_lea.vmem %s3, %s446
      %v1500 = vld [vmem:[%s1499] sm:$0x1]
      %v1502 = vlaneseq
      %v1503 = vshrl.u32 %v1502, 7
      %v1504 = vsub.s32 0, %v1503
      %v1505 = vrot.slane %v1500, %v1504
      %v1507 = vadd.f32 %v1483, %v1505
      %v1508 = vadd.f32 %v1484, %v1505
      %v1509 = vadd.f32 %v1485, %v1505
      %v1510 = vadd.f32 %v1486, %v1505
      %v1511 = vadd.f32 %v1487, %v1505
      %v1512 = vadd.f32 %v1488, %v1505
      %v1513 = vadd.f32 %v1489, %v1505
      %v1514 = vadd.f32 %v1490, %v1505
      %v1515 = vadd.f32 %v1491, %v1505
      %v1516 = vadd.f32 %v1492, %v1505
      %v1517 = vadd.f32 %v1493, %v1505
      %v1518 = vadd.f32 %v1494, %v1505
      %v1519 = vadd.f32 %v1495, %v1505
      %v1520 = vadd.f32 %v1496, %v1505
      %v1521 = vadd.f32 %v1497, %v1505
      %v1522 = vadd.f32 %v1498, %v1505
      %v1523 = vpack.c.bf16 %v1508, %v1507
      %v1524 = vpack.c.bf16 %v1510, %v1509
      %v1525 = vpack.c.bf16 %v1512, %v1511
      %v1526 = vpack.c.bf16 %v1514, %v1513
      %v1527 = vpack.c.bf16 %v1516, %v1515
      %v1528 = vpack.c.bf16 %v1518, %v1517
      %v1529 = vpack.c.bf16 %v1520, %v1519
      %v1530 = vpack.c.bf16 %v1522, %v1521
      %s1531 = smul.u32 %s446, 16
      %s1532 = smul.addr %s1531, 4
      %s1533 = scalar_lea.vmem [#allocation7], %s1532
      %v1534 = vld [vmem:[%s1533] sm:$0xf]
      %v1535 = vld [vmem:[%s1533 + $0x4] sm:$0xf]
      %v1536 = vld [vmem:[%s1533 + $0x8] sm:$0xf]
      %v1537 = vld [vmem:[%s1533 + $0xc] sm:$0xf]
      %v1538 = vld [vmem:[%s1533 + $0x10] sm:$0xf]
      %v1539 = vld [vmem:[%s1533 + $0x14] sm:$0xf]
      %v1540 = vld [vmem:[%s1533 + $0x18] sm:$0xf]
      %v1541 = vld [vmem:[%s1533 + $0x1c] sm:$0xf]
      %v1542 = vld [vmem:[%s1533 + $0x20] sm:$0xf]
      %v1543 = vld [vmem:[%s1533 + $0x24] sm:$0xf]
      %v1544 = vld [vmem:[%s1533 + $0x28] sm:$0xf]
      %v1545 = vld [vmem:[%s1533 + $0x2c] sm:$0xf]
      %v1546 = vld [vmem:[%s1533 + $0x30] sm:$0xf]
      %v1547 = vld [vmem:[%s1533 + $0x34] sm:$0xf]
      %v1548 = vld [vmem:[%s1533 + $0x38] sm:$0xf]
      %v1549 = vld [vmem:[%s1533 + $0x3c] sm:$0xf]
      %s1550 = scalar_lea.vmem %s5, %s446
      %v1551 = vld [vmem:[%s1550] sm:$0x1]
      %v1553 = vlaneseq
      %v1554 = vshrl.u32 %v1553, 7
      %v1555 = vsub.s32 0, %v1554
      %v1556 = vrot.slane %v1551, %v1555
      %v1574 = vunpack.c.l.b16 %v1534
      %v1575 = vunpack.c.l.b16 %v1535
      %v1576 = vunpack.c.l.b16 %v1536
      %v1577 = vunpack.c.l.b16 %v1537
      %v1578 = vunpack.c.l.b16 %v1538
      %v1579 = vunpack.c.l.b16 %v1539
      %v1580 = vunpack.c.l.b16 %v1540
      %v1581 = vunpack.c.l.b16 %v1541
      %v1582 = vunpack.c.l.b16 %v1542
      %v1583 = vunpack.c.l.b16 %v1543
      %v1584 = vunpack.c.l.b16 %v1544
      %v1585 = vunpack.c.l.b16 %v1545
      %v1586 = vunpack.c.l.b16 %v1546
      %v1587 = vunpack.c.l.b16 %v1547
      %v1588 = vunpack.c.l.b16 %v1548
      %v1589 = vunpack.c.l.b16 %v1549
      %v1590 = vpack.c.b16 %v1575, %v1574
      %v1591 = vpack.c.b16 %v1577, %v1576
      %v1592 = vpack.c.b16 %v1579, %v1578
      %v1593 = vpack.c.b16 %v1581, %v1580
      %v1594 = vpack.c.b16 %v1583, %v1582
      %v1595 = vpack.c.b16 %v1585, %v1584
      %v1596 = vpack.c.b16 %v1587, %v1586
      %v1597 = vpack.c.b16 %v1589, %v1588
      %1606 = vmatprep.subr.bf16.mxu0 0
      %1607 = vmatpush1.bf16.msra.mxu0 %v1597
      %1608 = vmatprep.subr.bf16.mxu0 0
      %1609 = vmatpush1.bf16.msra.mxu0 %v1596
      %1610 = vmatprep.subr.bf16.mxu0 0
      %1611 = vmatpush1.bf16.msra.mxu0 %v1595
      %1612 = vmatprep.subr.bf16.mxu0 0
      %1613 = vmatpush1.bf16.msra.mxu0 %v1594
      %1614 = vmatprep.subr.bf16.mxu0 0
      %1615 = vmatpush1.bf16.msra.mxu0 %v1593
      %1616 = vmatprep.subr.bf16.mxu0 0
      %1617 = vmatpush1.bf16.msra.mxu0 %v1592
      %1618 = vmatprep.subr.bf16.mxu0 0
      %1619 = vmatpush1.bf16.msra.mxu0 %v1591
      %1620 = vmatprep.subr.bf16.mxu0 0
      %1621 = vmatpush1.bf16.msra.mxu0 %v1590
      %1622 = vmatprep.subr.bf16.mxu0 0
      %1623 = vmatpush2.bf16.msra.mxu0 0
      %1624 = vmatprep.subr.bf16.mxu0 0
      %1625 = vmatpush2.bf16.msra.mxu0 0
      %1626 = vmatprep.subr.bf16.mxu0 0
      %1627 = vmatpush2.bf16.msra.mxu0 0
      %1628 = vmatprep.subr.bf16.mxu0 0
      %1629 = vmatpush2.bf16.msra.mxu0 0
      %1630 = vmatprep.subr.bf16.mxu0 0
      %1631 = vmatpush2.bf16.msra.mxu0 0
      %1632 = vmatprep.subr.bf16.mxu0 0
      %1633 = vmatpush2.bf16.msra.mxu0 0
      %1634 = vmatprep.subr.bf16.mxu0 0
      %1635 = vmatpush2.bf16.msra.mxu0 0
      %1636 = vmatprep.subr.bf16.mxu0 0
      %1637 = vmatpush2.bf16.msra.mxu0 0
      %1638 = vmatprep.mubr.bf16.mxu0 0
      %1639 = vmatmul.mubr.bf16.gmra.mxu0 %v1523
      %v1640 = vpop.f32.mrf.mxu0
      %v1641 = vadd.f32 %v1556, %v1640
      %v1642 = vpop.f32.mrf.mxu0
      %v1643 = vpop.f32.mrf.mxu0
      %v1644 = vadd.f32 %v1556, %v1643
      %v1645 = vpop.f32.mrf.mxu0
      %1646 = vmatprep.mubr.bf16.mxu0 0
      %1647 = vmatmul.mubr.bf16.gmra.mxu0 %v1524
      %v1648 = vpop.f32.mrf.mxu0
      %v1649 = vadd.f32 %v1556, %v1648
      %v1650 = vpop.f32.mrf.mxu0
      %v1651 = vpop.f32.mrf.mxu0
      %v1652 = vadd.f32 %v1556, %v1651
      %v1653 = vpop.f32.mrf.mxu0
      %1654 = vmatprep.mubr.bf16.mxu0 0
      %1655 = vmatmul.mubr.bf16.gmra.mxu0 %v1525
      %v1656 = vpop.f32.mrf.mxu0
      %v1657 = vadd.f32 %v1556, %v1656
      %v1658 = vpop.f32.mrf.mxu0
      %v1659 = vpop.f32.mrf.mxu0
      %v1660 = vadd.f32 %v1556, %v1659
      %v1661 = vpop.f32.mrf.mxu0
      %1662 = vmatprep.mubr.bf16.mxu0 0
      %1663 = vmatmul.mubr.bf16.gmra.mxu0 %v1526
      %v1664 = vpop.f32.mrf.mxu0
      %v1665 = vadd.f32 %v1556, %v1664
      %v1666 = vpop.f32.mrf.mxu0
      %v1667 = vpop.f32.mrf.mxu0
      %v1668 = vadd.f32 %v1556, %v1667
      %v1669 = vpop.f32.mrf.mxu0
      %1670 = vmatprep.mubr.bf16.mxu0 0
      %1671 = vmatmul.mubr.bf16.gmra.mxu0 %v1527
      %v1672 = vpop.f32.mrf.mxu0
      %v1673 = vadd.f32 %v1556, %v1672
      %v1674 = vpop.f32.mrf.mxu0
      %v1675 = vpop.f32.mrf.mxu0
      %v1676 = vadd.f32 %v1556, %v1675
      %v1677 = vpop.f32.mrf.mxu0
      %1678 = vmatprep.mubr.bf16.mxu0 0
      %1679 = vmatmul.mubr.bf16.gmra.mxu0 %v1528
      %v1680 = vpop.f32.mrf.mxu0
      %v1681 = vadd.f32 %v1556, %v1680
      %v1682 = vpop.f32.mrf.mxu0
      %v1683 = vpop.f32.mrf.mxu0
      %v1684 = vadd.f32 %v1556, %v1683
      %v1685 = vpop.f32.mrf.mxu0
      %1686 = vmatprep.mubr.bf16.mxu0 0
      %1687 = vmatmul.mubr.bf16.gmra.mxu0 %v1529
      %v1688 = vpop.f32.mrf.mxu0
      %v1689 = vadd.f32 %v1556, %v1688
      %v1690 = vpop.f32.mrf.mxu0
      %v1691 = vpop.f32.mrf.mxu0
      %v1692 = vadd.f32 %v1556, %v1691
      %v1693 = vpop.f32.mrf.mxu0
      %1694 = vmatprep.mubr.bf16.mxu0 0
      %1695 = vmatmul.mubr.bf16.gmra.mxu0 %v1530
      %v1696 = vpop.f32.mrf.mxu0
      %v1697 = vadd.f32 %v1556, %v1696
      %v1698 = vpop.f32.mrf.mxu0
      %v1699 = vpop.f32.mrf.mxu0
      %v1700 = vadd.f32 %v1556, %v1699
      %v1701 = vpop.f32.mrf.mxu0
      %1702 = vdwg.mxu0
      %v1703 = vmax.f32 %v1641, 0.0
      %v1704 = vmax.f32 %v1644, 0.0
      %v1705 = vmax.f32 %v1649, 0.0
      %v1706 = vmax.f32 %v1652, 0.0
      %v1707 = vmax.f32 %v1657, 0.0
      %v1708 = vmax.f32 %v1660, 0.0
      %v1709 = vmax.f32 %v1665, 0.0
      %v1710 = vmax.f32 %v1668, 0.0
      %v1711 = vmax.f32 %v1673, 0.0
      %v1712 = vmax.f32 %v1676, 0.0
      %v1713 = vmax.f32 %v1681, 0.0
      %v1714 = vmax.f32 %v1684, 0.0
      %v1715 = vmax.f32 %v1689, 0.0
      %v1716 = vmax.f32 %v1692, 0.0
      %v1717 = vmax.f32 %v1697, 0.0
      %v1718 = vmax.f32 %v1700, 0.0
      %v1719 = vpack.c.bf16 %v1704, %v1703
      %v1720 = vpack.c.bf16 %v1706, %v1705
      %v1721 = vpack.c.bf16 %v1708, %v1707
      %v1722 = vpack.c.bf16 %v1710, %v1709
      %v1723 = vpack.c.bf16 %v1712, %v1711
      %v1724 = vpack.c.bf16 %v1714, %v1713
      %v1725 = vpack.c.bf16 %v1716, %v1715
      %v1726 = vpack.c.bf16 %v1718, %v1717
      %s1727 = smul.addr %s1531, 4
      %s1728 = scalar_lea.vmem [#allocation8], %s1727
      %v1729 = vld [vmem:[%s1728] sm:$0xf]
      %v1730 = vld [vmem:[%s1728 + $0x4] sm:$0xf]
      %v1731 = vld [vmem:[%s1728 + $0x8] sm:$0xf]
      %v1732 = vld [vmem:[%s1728 + $0xc] sm:$0xf]
      %v1733 = vld [vmem:[%s1728 + $0x10] sm:$0xf]
      %v1734 = vld [vmem:[%s1728 + $0x14] sm:$0xf]
      %v1735 = vld [vmem:[%s1728 + $0x18] sm:$0xf]
      %v1736 = vld [vmem:[%s1728 + $0x1c] sm:$0xf]
      %v1737 = vld [vmem:[%s1728 + $0x20] sm:$0xf]
      %v1738 = vld [vmem:[%s1728 + $0x24] sm:$0xf]
      %v1739 = vld [vmem:[%s1728 + $0x28] sm:$0xf]
      %v1740 = vld [vmem:[%s1728 + $0x2c] sm:$0xf]
      %v1741 = vld [vmem:[%s1728 + $0x30] sm:$0xf]
      %v1742 = vld [vmem:[%s1728 + $0x34] sm:$0xf]
      %v1743 = vld [vmem:[%s1728 + $0x38] sm:$0xf]
      %v1744 = vld [vmem:[%s1728 + $0x3c] sm:$0xf]
      %s1745 = scalar_lea.vmem %s7, %s446
      %v1746 = vld [vmem:[%s1745] sm:$0x1]
      %v1748 = vlaneseq
      %v1749 = vshrl.u32 %v1748, 7
      %v1750 = vsub.s32 0, %v1749
      %v1751 = vrot.slane %v1746, %v1750
      %v1769 = vunpack.c.l.b16 %v1729
      %v1770 = vunpack.c.l.b16 %v1730
      %v1771 = vunpack.c.l.b16 %v1731
      %v1772 = vunpack.c.l.b16 %v1732
      %v1773 = vunpack.c.l.b16 %v1733
      %v1774 = vunpack.c.l.b16 %v1734
      %v1775 = vunpack.c.l.b16 %v1735
      %v1776 = vunpack.c.l.b16 %v1736
      %v1777 = vunpack.c.l.b16 %v1737
      %v1778 = vunpack.c.l.b16 %v1738
      %v1779 = vunpack.c.l.b16 %v1739
      %v1780 = vunpack.c.l.b16 %v1740
      %v1781 = vunpack.c.l.b16 %v1741
      %v1782 = vunpack.c.l.b16 %v1742
      %v1783 = vunpack.c.l.b16 %v1743
      %v1784 = vunpack.c.l.b16 %v1744
      %v1785 = vpack.c.b16 %v1770, %v1769
      %v1786 = vpack.c.b16 %v1772, %v1771
      %v1787 = vpack.c.b16 %v1774, %v1773
      %v1788 = vpack.c.b16 %v1776, %v1775
      %v1789 = vpack.c.b16 %v1778, %v1777
      %v1790 = vpack.c.b16 %v1780, %v1779
      %v1791 = vpack.c.b16 %v1782, %v1781
      %v1792 = vpack.c.b16 %v1784, %v1783
      %1801 = vmatprep.subr.bf16.mxu0 0
      %1802 = vmatpush1.bf16.msra.mxu0 %v1792
      %1803 = vmatprep.subr.bf16.mxu0 0
      %1804 = vmatpush1.bf16.msra.mxu0 %v1791
      %1805 = vmatprep.subr.bf16.mxu0 0
      %1806 = vmatpush1.bf16.msra.mxu0 %v1790
      %1807 = vmatprep.subr.bf16.mxu0 0
      %1808 = vmatpush1.bf16.msra.mxu0 %v1789
      %1809 = vmatprep.subr.bf16.mxu0 0
      %1810 = vmatpush1.bf16.msra.mxu0 %v1788
      %1811 = vmatprep.subr.bf16.mxu0 0
      %1812 = vmatpush1.bf16.msra.mxu0 %v1787
      %1813 = vmatprep.subr.bf16.mxu0 0
      %1814 = vmatpush1.bf16.msra.mxu0 %v1786
      %1815 = vmatprep.subr.bf16.mxu0 0
      %1816 = vmatpush1.bf16.msra.mxu0 %v1785
      %1817 = vmatprep.subr.bf16.mxu0 0
      %1818 = vmatpush2.bf16.msra.mxu0 0
      %1819 = vmatprep.subr.bf16.mxu0 0
      %1820 = vmatpush2.bf16.msra.mxu0 0
      %1821 = vmatprep.subr.bf16.mxu0 0
      %1822 = vmatpush2.bf16.msra.mxu0 0
      %1823 = vmatprep.subr.bf16.mxu0 0
      %1824 = vmatpush2.bf16.msra.mxu0 0
      %1825 = vmatprep.subr.bf16.mxu0 0
      %1826 = vmatpush2.bf16.msra.mxu0 0
      %1827 = vmatprep.subr.bf16.mxu0 0
      %1828 = vmatpush2.bf16.msra.mxu0 0
      %1829 = vmatprep.subr.bf16.mxu0 0
      %1830 = vmatpush2.bf16.msra.mxu0 0
      %1831 = vmatprep.subr.bf16.mxu0 0
      %1832 = vmatpush2.bf16.msra.mxu0 0
      %1833 = vmatprep.mubr.bf16.mxu0 0
      %1834 = vmatmul.mubr.bf16.gmra.mxu0 %v1719
      %v1835 = vpop.f32.mrf.mxu0
      %v1836 = vadd.f32 %v1751, %v1835
      %v1837 = vpop.f32.mrf.mxu0
      %v1838 = vpop.f32.mrf.mxu0
      %v1839 = vadd.f32 %v1751, %v1838
      %v1840 = vpop.f32.mrf.mxu0
      %1841 = vmatprep.mubr.bf16.mxu0 0
      %1842 = vmatmul.mubr.bf16.gmra.mxu0 %v1720
      %v1843 = vpop.f32.mrf.mxu0
      %v1844 = vadd.f32 %v1751, %v1843
      %v1845 = vpop.f32.mrf.mxu0
      %v1846 = vpop.f32.mrf.mxu0
      %v1847 = vadd.f32 %v1751, %v1846
      %v1848 = vpop.f32.mrf.mxu0
      %1849 = vmatprep.mubr.bf16.mxu0 0
      %1850 = vmatmul.mubr.bf16.gmra.mxu0 %v1721
      %v1851 = vpop.f32.mrf.mxu0
      %v1852 = vadd.f32 %v1751, %v1851
      %v1853 = vpop.f32.mrf.mxu0
      %v1854 = vpop.f32.mrf.mxu0
      %v1855 = vadd.f32 %v1751, %v1854
      %v1856 = vpop.f32.mrf.mxu0
      %1857 = vmatprep.mubr.bf16.mxu0 0
      %1858 = vmatmul.mubr.bf16.gmra.mxu0 %v1722
      %v1859 = vpop.f32.mrf.mxu0
      %v1860 = vadd.f32 %v1751, %v1859
      %v1861 = vpop.f32.mrf.mxu0
      %v1862 = vpop.f32.mrf.mxu0
      %v1863 = vadd.f32 %v1751, %v1862
      %v1864 = vpop.f32.mrf.mxu0
      %1865 = vmatprep.mubr.bf16.mxu0 0
      %1866 = vmatmul.mubr.bf16.gmra.mxu0 %v1723
      %v1867 = vpop.f32.mrf.mxu0
      %v1868 = vadd.f32 %v1751, %v1867
      %v1869 = vpop.f32.mrf.mxu0
      %v1870 = vpop.f32.mrf.mxu0
      %v1871 = vadd.f32 %v1751, %v1870
      %v1872 = vpop.f32.mrf.mxu0
      %1873 = vmatprep.mubr.bf16.mxu0 0
      %1874 = vmatmul.mubr.bf16.gmra.mxu0 %v1724
      %v1875 = vpop.f32.mrf.mxu0
      %v1876 = vadd.f32 %v1751, %v1875
      %v1877 = vpop.f32.mrf.mxu0
      %v1878 = vpop.f32.mrf.mxu0
      %v1879 = vadd.f32 %v1751, %v1878
      %v1880 = vpop.f32.mrf.mxu0
      %1881 = vmatprep.mubr.bf16.mxu0 0
      %1882 = vmatmul.mubr.bf16.gmra.mxu0 %v1725
      %v1883 = vpop.f32.mrf.mxu0
      %v1884 = vadd.f32 %v1751, %v1883
      %v1885 = vpop.f32.mrf.mxu0
      %v1886 = vpop.f32.mrf.mxu0
      %v1887 = vadd.f32 %v1751, %v1886
      %v1888 = vpop.f32.mrf.mxu0
      %1889 = vmatprep.mubr.bf16.mxu0 0
      %1890 = vmatmul.mubr.bf16.gmra.mxu0 %v1726
      %v1891 = vpop.f32.mrf.mxu0
      %v1892 = vadd.f32 %v1751, %v1891
      %v1893 = vpop.f32.mrf.mxu0
      %v1894 = vpop.f32.mrf.mxu0
      %v1895 = vadd.f32 %v1751, %v1894
      %v1896 = vpop.f32.mrf.mxu0
      %1897 = vdwg.mxu0
      %v1898 = vadd.f32 %v1507, %v1836
      %v1899 = vadd.f32 %v1508, %v1839
      %v1900 = vadd.f32 %v1509, %v1844
      %v1901 = vadd.f32 %v1510, %v1847
      %v1902 = vadd.f32 %v1511, %v1852
      %v1903 = vadd.f32 %v1512, %v1855
      %v1904 = vadd.f32 %v1513, %v1860
      %v1905 = vadd.f32 %v1514, %v1863
      %v1906 = vadd.f32 %v1515, %v1868
      %v1907 = vadd.f32 %v1516, %v1871
      %v1908 = vadd.f32 %v1517, %v1876
      %v1909 = vadd.f32 %v1518, %v1879
      %v1910 = vadd.f32 %v1519, %v1884
      %v1911 = vadd.f32 %v1520, %v1887
      %v1912 = vadd.f32 %v1521, %v1892
      %v1913 = vadd.f32 %v1522, %v1895
      %1914 = vadd.xlane.f32.xlu0 %v1898
      %v1915 = vpop.xlane.xlu0 %1914
      %1916 = vadd.xlane.f32.xlu0 %v1899
      %v1917 = vpop.xlane.xlu0 %1916
      %1918 = vadd.xlane.f32.xlu0 %v1900
      %v1919 = vpop.xlane.xlu0 %1918
      %1920 = vadd.xlane.f32.xlu0 %v1901
      %v1921 = vpop.xlane.xlu0 %1920
      %1922 = vadd.xlane.f32.xlu0 %v1902
      %v1923 = vpop.xlane.xlu0 %1922
      %1924 = vadd.xlane.f32.xlu0 %v1903
      %v1925 = vpop.xlane.xlu0 %1924
      %1926 = vadd.xlane.f32.xlu0 %v1904
      %v1927 = vpop.xlane.xlu0 %1926
      %1928 = vadd.xlane.f32.xlu0 %v1905
      %v1929 = vpop.xlane.xlu0 %1928
      %1930 = vadd.xlane.f32.xlu0 %v1906
      %v1931 = vpop.xlane.xlu0 %1930
      %1932 = vadd.xlane.f32.xlu0 %v1907
      %v1933 = vpop.xlane.xlu0 %1932
      %1934 = vadd.xlane.f32.xlu0 %v1908
      %v1935 = vpop.xlane.xlu0 %1934
      %1936 = vadd.xlane.f32.xlu0 %v1909
      %v1937 = vpop.xlane.xlu0 %1936
      %1938 = vadd.xlane.f32.xlu0 %v1910
      %v1939 = vpop.xlane.xlu0 %1938
      %1940 = vadd.xlane.f32.xlu0 %v1911
      %v1941 = vpop.xlane.xlu0 %1940
      %1942 = vadd.xlane.f32.xlu0 %v1912
      %v1943 = vpop.xlane.xlu0 %1942
      %1944 = vadd.xlane.f32.xlu0 %v1913
      %v1945 = vpop.xlane.xlu0 %1944
      %v1946 = vmul.f32 %v1915, %v1330
      %v1947 = vmul.f32 %v1917, %v1330
      %v1948 = vmul.f32 %v1919, %v1330
      %v1949 = vmul.f32 %v1921, %v1330
      %v1950 = vmul.f32 %v1923, %v1330
      %v1951 = vmul.f32 %v1925, %v1330
      %v1952 = vmul.f32 %v1927, %v1330
      %v1953 = vmul.f32 %v1929, %v1330
      %v1954 = vmul.f32 %v1931, %v1330
      %v1955 = vmul.f32 %v1933, %v1330
      %v1956 = vmul.f32 %v1935, %v1330
      %v1957 = vmul.f32 %v1937, %v1330
      %v1958 = vmul.f32 %v1939, %v1330
      %v1959 = vmul.f32 %v1941, %v1330
      %v1960 = vmul.f32 %v1943, %v1330
      %v1961 = vmul.f32 %v1945, %v1330
      %v1962 = vsub.f32 %v1898, %v1946
      %v1963 = vsub.f32 %v1899, %v1947
      %v1964 = vsub.f32 %v1900, %v1948
      %v1965 = vsub.f32 %v1901, %v1949
      %v1966 = vsub.f32 %v1902, %v1950
      %v1967 = vsub.f32 %v1903, %v1951
      %v1968 = vsub.f32 %v1904, %v1952
      %v1969 = vsub.f32 %v1905, %v1953
      %v1970 = vsub.f32 %v1906, %v1954
      %v1971 = vsub.f32 %v1907, %v1955
      %v1972 = vsub.f32 %v1908, %v1956
      %v1973 = vsub.f32 %v1909, %v1957
      %v1974 = vsub.f32 %v1910, %v1958
      %v1975 = vsub.f32 %v1911, %v1959
      %v1976 = vsub.f32 %v1912, %v1960
      %v1977 = vsub.f32 %v1913, %v1961
      %v1978 = vmul.f32 %v1962, %v1962
      %v1979 = vmul.f32 %v1963, %v1963
      %v1980 = vmul.f32 %v1964, %v1964
      %v1981 = vmul.f32 %v1965, %v1965
      %v1982 = vmul.f32 %v1966, %v1966
      %v1983 = vmul.f32 %v1967, %v1967
      %v1984 = vmul.f32 %v1968, %v1968
      %v1985 = vmul.f32 %v1969, %v1969
      %v1986 = vmul.f32 %v1970, %v1970
      %v1987 = vmul.f32 %v1971, %v1971
      %v1988 = vmul.f32 %v1972, %v1972
      %v1989 = vmul.f32 %v1973, %v1973
      %v1990 = vmul.f32 %v1974, %v1974
      %v1991 = vmul.f32 %v1975, %v1975
      %v1992 = vmul.f32 %v1976, %v1976
      %v1993 = vmul.f32 %v1977, %v1977
      %1994 = vadd.xlane.f32.xlu0 %v1978
      %v1995 = vpop.xlane.xlu0 %1994
      %1996 = vadd.xlane.f32.xlu0 %v1979
      %v1997 = vpop.xlane.xlu0 %1996
      %1998 = vadd.xlane.f32.xlu0 %v1980
      %v1999 = vpop.xlane.xlu0 %1998
      %2000 = vadd.xlane.f32.xlu0 %v1981
      %v2001 = vpop.xlane.xlu0 %2000
      %2002 = vadd.xlane.f32.xlu0 %v1982
      %v2003 = vpop.xlane.xlu0 %2002
      %2004 = vadd.xlane.f32.xlu0 %v1983
      %v2005 = vpop.xlane.xlu0 %2004
      %2006 = vadd.xlane.f32.xlu0 %v1984
      %v2007 = vpop.xlane.xlu0 %2006
      %2008 = vadd.xlane.f32.xlu0 %v1985
      %v2009 = vpop.xlane.xlu0 %2008
      %2010 = vadd.xlane.f32.xlu0 %v1986
      %v2011 = vpop.xlane.xlu0 %2010
      %2012 = vadd.xlane.f32.xlu0 %v1987
      %v2013 = vpop.xlane.xlu0 %2012
      %2014 = vadd.xlane.f32.xlu0 %v1988
      %v2015 = vpop.xlane.xlu0 %2014
      %2016 = vadd.xlane.f32.xlu0 %v1989
      %v2017 = vpop.xlane.xlu0 %2016
      %2018 = vadd.xlane.f32.xlu0 %v1990
      %v2019 = vpop.xlane.xlu0 %2018
      %2020 = vadd.xlane.f32.xlu0 %v1991
      %v2021 = vpop.xlane.xlu0 %2020
      %2022 = vadd.xlane.f32.xlu0 %v1992
      %v2023 = vpop.xlane.xlu0 %2022
      %2024 = vadd.xlane.f32.xlu0 %v1993
      %v2025 = vpop.xlane.xlu0 %2024
      %v2026 = vmul.f32 %v1995, %v1330
      %v2027 = vmul.f32 %v1997, %v1330
      %v2028 = vmul.f32 %v1999, %v1330
      %v2029 = vmul.f32 %v2001, %v1330
      %v2030 = vmul.f32 %v2003, %v1330
      %v2031 = vmul.f32 %v2005, %v1330
      %v2032 = vmul.f32 %v2007, %v1330
      %v2033 = vmul.f32 %v2009, %v1330
      %v2034 = vmul.f32 %v2011, %v1330
      %v2035 = vmul.f32 %v2013, %v1330
      %v2036 = vmul.f32 %v2015, %v1330
      %v2037 = vmul.f32 %v2017, %v1330
      %v2038 = vmul.f32 %v2019, %v1330
      %v2039 = vmul.f32 %v2021, %v1330
      %v2040 = vmul.f32 %v2023, %v1330
      %v2041 = vmul.f32 %v2025, %v1330
      %v2042 = vadd.f32 %v2026, 1e-05
      %v2043 = vadd.f32 %v2027, 1e-05
      %v2044 = vadd.f32 %v2028, 1e-05
      %v2045 = vadd.f32 %v2029, 1e-05
      %v2046 = vadd.f32 %v2030, 1e-05
      %v2047 = vadd.f32 %v2031, 1e-05
      %v2048 = vadd.f32 %v2032, 1e-05
      %v2049 = vadd.f32 %v2033, 1e-05
      %v2050 = vadd.f32 %v2034, 1e-05
      %v2051 = vadd.f32 %v2035, 1e-05
      %v2052 = vadd.f32 %v2036, 1e-05
      %v2053 = vadd.f32 %v2037, 1e-05
      %v2054 = vadd.f32 %v2038, 1e-05
      %v2055 = vadd.f32 %v2039, 1e-05
      %v2056 = vadd.f32 %v2040, 1e-05
      %v2057 = vadd.f32 %v2041, 1e-05
      %v2058 = vrsqrt.pop %v2042
      %v2059 = vrsqrt.pop %v2043
      %v2060 = vrsqrt.pop %v2044
      %v2061 = vrsqrt.pop %v2045
      %v2062 = vrsqrt.pop %v2046
      %v2063 = vrsqrt.pop %v2047
      %v2064 = vrsqrt.pop %v2048
      %v2065 = vrsqrt.pop %v2049
      %v2066 = vrsqrt.pop %v2050
      %v2067 = vrsqrt.pop %v2051
      %v2068 = vrsqrt.pop %v2052
      %v2069 = vrsqrt.pop %v2053
      %v2070 = vrsqrt.pop %v2054
      %v2071 = vrsqrt.pop %v2055
      %v2072 = vrsqrt.pop %v2056
      %v2073 = vrsqrt.pop %v2057
      %v2074 = vmul.f32 %v1962, %v2058
      %v2075 = vmul.f32 %v1963, %v2059
      %v2076 = vmul.f32 %v1964, %v2060
      %v2077 = vmul.f32 %v1965, %v2061
      %v2078 = vmul.f32 %v1966, %v2062
      %v2079 = vmul.f32 %v1967, %v2063
      %v2080 = vmul.f32 %v1968, %v2064
      %v2081 = vmul.f32 %v1969, %v2065
      %v2082 = vmul.f32 %v1970, %v2066
      %v2083 = vmul.f32 %v1971, %v2067
      %v2084 = vmul.f32 %v1972, %v2068
      %v2085 = vmul.f32 %v1973, %v2069
      %v2086 = vmul.f32 %v1974, %v2070
      %v2087 = vmul.f32 %v1975, %v2071
      %v2088 = vmul.f32 %v1976, %v2072
      %v2089 = vmul.f32 %v1977, %v2073
      %s2090 = scalar_lea.vmem %s8, %s446
      %v2091 = vld [vmem:[%s2090] sm:$0x1]
      %v2093 = vlaneseq
      %v2094 = vshrl.u32 %v2093, 7
      %v2095 = vsub.s32 0, %v2094
      %v2096 = vrot.slane %v2091, %v2095
      %v2098 = vmul.f32 %v2074, %v2096
      %v2099 = vmul.f32 %v2075, %v2096
      %v2100 = vmul.f32 %v2076, %v2096
      %v2101 = vmul.f32 %v2077, %v2096
      %v2102 = vmul.f32 %v2078, %v2096
      %v2103 = vmul.f32 %v2079, %v2096
      %v2104 = vmul.f32 %v2080, %v2096
      %v2105 = vmul.f32 %v2081, %v2096
      %v2106 = vmul.f32 %v2082, %v2096
      %v2107 = vmul.f32 %v2083, %v2096
      %v2108 = vmul.f32 %v2084, %v2096
      %v2109 = vmul.f32 %v2085, %v2096
      %v2110 = vmul.f32 %v2086, %v2096
      %v2111 = vmul.f32 %v2087, %v2096
      %v2112 = vmul.f32 %v2088, %v2096
      %v2113 = vmul.f32 %v2089, %v2096
      %s2114 = scalar_lea.vmem %s9, %s446
      %v2115 = vld [vmem:[%s2114] sm:$0x1]
      %v2117 = vlaneseq
      %v2118 = vshrl.u32 %v2117, 7
      %v2119 = vsub.s32 0, %v2118
      %v2120 = vrot.slane %v2115, %v2119
      %v2122 = vadd.f32 %v2098, %v2120
      %v2123 = vadd.f32 %v2099, %v2120
      %v2124 = vadd.f32 %v2100, %v2120
      %v2125 = vadd.f32 %v2101, %v2120
      %v2126 = vadd.f32 %v2102, %v2120
      %v2127 = vadd.f32 %v2103, %v2120
      %v2128 = vadd.f32 %v2104, %v2120
      %v2129 = vadd.f32 %v2105, %v2120
      %v2130 = vadd.f32 %v2106, %v2120
      %v2131 = vadd.f32 %v2107, %v2120
      %v2132 = vadd.f32 %v2108, %v2120
      %v2133 = vadd.f32 %v2109, %v2120
      %v2134 = vadd.f32 %v2110, %v2120
      %v2135 = vadd.f32 %v2111, %v2120
      %v2136 = vadd.f32 %v2112, %v2120
      %v2137 = vadd.f32 %v2113, %v2120
    $region62: #{tpu_custom_call.1} parent=1 // loop_footer
      %s450 = sadd.s32 1, %s446
    $region63: #{tpu_custom_call.1} parent=1 // loop_footer_branch
      %445 = sbr.rel target = $region59
    $region64: #{tpu_custom_call.1} parent=1 // loop_exit
      _
    %2138 = vst [vmem:[#allocation10] sm:$0xff] %v451
    %2139 = vst [vmem:[#allocation10 + $0x8] sm:$0xff] %v452
    %2140 = vst [vmem:[#allocation10 + $0x10] sm:$0xff] %v453
    %2141 = vst [vmem:[#allocation10 + $0x18] sm:$0xff] %v454
    %2142 = vst [vmem:[#allocation10 + $0x20] sm:$0xff] %v455
    %2143 = vst [vmem:[#allocation10 + $0x28] sm:$0xff] %v456
    %2144 = vst [vmem:[#allocation10 + $0x30] sm:$0xff] %v457
    %2145 = vst [vmem:[#allocation10 + $0x38] sm:$0xff] %v458
    %2146 = vst [vmem:[#allocation10 + $0x40] sm:$0xff] %v459
    %2147 = vst [vmem:[#allocation10 + $0x48] sm:$0xff] %v460
    %2148 = vst [vmem:[#allocation10 + $0x50] sm:$0xff] %v461
    %2149 = vst [vmem:[#allocation10 + $0x58] sm:$0xff] %v462
    %2150 = vst [vmem:[#allocation10 + $0x60] sm:$0xff] %v463
    %2151 = vst [vmem:[#allocation10 + $0x68] sm:$0xff] %v464
    %2152 = vst [vmem:[#allocation10 + $0x70] sm:$0xff] %v465
    %2153 = vst [vmem:[#allocation10 + $0x78] sm:$0xff] %v466
    // Predicated region
    $region65: #{tpu_custom_call.1} parent=1 // pred_check
      _
    $region66: #{tpu_custom_call.1} parent=1 // pred_check_branch
      %2155 = sbr.rel (0) target = $region68
    $region67: #{tpu_custom_call.1} parent=1 // pred_region
      %s2157 = ssub.s32 2048, 2048
      %2158 = vsyncadd [#allocation4], %s2157
      %s2159 = sshll.u32 [#allocation10], 4
      %s2160 = int_to_ptr.vmem [resolvable:$true] %s2159
      %2165 = dma.vmem_to_hbm [thread:$0]  %s2160, 2048, %s10, [#allocation4], 128, 128, 8
    $region68: #{tpu_custom_call.1} parent=1 // pred_fallthru
      _
    // Predicated region
    $region69: #{tpu_custom_call.1} parent=1 // pred_check
      _
    $region70: #{tpu_custom_call.1} parent=1 // pred_check_branch
      %2167 = sbr.rel (0) target = $region72
    $region71: #{tpu_custom_call.1} parent=1 // pred_region
      %2168 = dma.done [#allocation4], 2048
    $region72: #{tpu_custom_call.1} parent=1 // pred_fallthru
      _
    %2169 = vsyncpa [#allocation3], 1
    %2170 = vsyncpa [#allocation6], 1
    %2171 = vsyncpa [#allocation9], 1
    %2172 = vsyncpa [#allocation4], 1

</llo_original>
